<compile_context>
chip_gen: v6e
topology: v6e:2x2x1
jax: 0.10.0
libtpu: 0.0.40
codegen_flags: <defaults>
</compile_context>

<pallas_src>
import functools

import jax
import jax.numpy as jnp
from jax.experimental import pallas as pl
from jax.experimental.pallas import tpu as pltpu


# ---------------------------------------------------------------------------
# Fused Pallas kernel: the whole ASAP forward
# ---------------------------------------------------------------------------

def _asap_fused_kernel(
    # graph data
    sc_x_ref, sc_adj_ref, fc_x_ref, fc_adj_ref, bmean_ref, badd_ref,
    # GraphConv weights (lin_rel W, lin_rel b, lin_root W)
    sc1_wr_ref, sc1_br_ref, sc1_wt_ref,
    sc2_wr_ref, sc2_br_ref, sc2_wt_ref,
    fc1_wr_ref, fc1_br_ref, fc1_wt_ref,
    fc2_wr_ref, fc2_br_ref, fc2_wt_ref,
    # MLP head
    w1_ref, b1_ref, w2_ref, b2_ref, w3_ref, b3_ref,
    # output
    o_ref,
):
  f32 = jnp.float32
  hidden = w2_ref.shape[0]

  def gconv_relu(x, adj_norm, wr_ref, br_ref, wt_ref):
    # PyG GraphConv(aggr='mean'): lin_rel(mean_j x_j) + lin_root(x_i), then ReLU.
    # adj_norm already carries the 1/deg row scaling (folded in on the host side).
    agg = jnp.dot(adj_norm, x, preferred_element_type=f32)
    out = (jnp.dot(agg, wr_ref[...], preferred_element_type=f32)
           + br_ref[...]
           + jnp.dot(x, wt_ref[...], preferred_element_type=f32))
    return jnp.maximum(out, 0.0)

  # ---- SC branch (structural connectivity): global_mean_pool readout ----
  sc_adj = sc_adj_ref[...]
  bmean = bmean_ref[...]
  h = gconv_relu(sc_x_ref[...], sc_adj, sc1_wr_ref, sc1_br_ref, sc1_wt_ref)
  sc_p1 = jnp.dot(bmean, h, preferred_element_type=f32)
  h = gconv_relu(h, sc_adj, sc2_wr_ref, sc2_br_ref, sc2_wt_ref)
  sc_p2 = jnp.dot(bmean, h, preferred_element_type=f32)

  # ---- FC branch (functional connectivity): global_add_pool readout ----
  fc_adj = fc_adj_ref[...]
  badd = badd_ref[...]
  h = gconv_relu(fc_x_ref[...], fc_adj, fc1_wr_ref, fc1_br_ref, fc1_wt_ref)
  fc_p1 = jnp.dot(badd, h, preferred_element_type=f32)
  h = gconv_relu(h, fc_adj, fc2_wr_ref, fc2_br_ref, fc2_wt_ref)
  fc_p2 = jnp.dot(badd, h, preferred_element_type=f32)

  # ---- Head layer 1: dot(concat([sc_p1, sc_p2, fc_p1, fc_p2]), W1) expressed as a
  #      sum of four dots against W1's row blocks — no concat buffer materialized.
  h1 = (jnp.dot(sc_p1, w1_ref[0 * hidden:1 * hidden, :], preferred_element_type=f32)
        + jnp.dot(sc_p2, w1_ref[1 * hidden:2 * hidden, :], preferred_element_type=f32)
        + jnp.dot(fc_p1, w1_ref[2 * hidden:3 * hidden, :], preferred_element_type=f32)
        + jnp.dot(fc_p2, w1_ref[3 * hidden:4 * hidden, :], preferred_element_type=f32)
        + b1_ref[...])
  h1 = jnp.maximum(h1, 0.0)
  # dropout(p=0.0) == identity
  h2 = jnp.maximum(jnp.dot(h1, w2_ref[...], preferred_element_type=f32) + b2_ref[...], 0.0)
  z = jnp.dot(h2, w3_ref[...], preferred_element_type=f32) + b3_ref[...]

  # log_softmax over classes
  m = jnp.max(z, axis=-1, keepdims=True)
  lse = m + jnp.log(jnp.sum(jnp.exp(z - m), axis=-1, keepdims=True))
  o_ref[...] = z - lse


def _vmem_specs(n):
  return [pl.BlockSpec(memory_space=pltpu.MemorySpace.VMEM) for _ in range(n)]


def asap_fused_call(params, sc_x, sc_adj_norm, fc_x, fc_adj_norm, bmat_mean, bmat_add):
  """One pallas_call for the entire ASAP forward (num_layers=2 configuration)."""
  n, f_sc = sc_x.shape
  f_fc = fc_x.shape[1]
  g = bmat_mean.shape[0]

  sc1_wr, sc1_br, sc1_wt = params["sc_conv1"]
  (sc2_wr, sc2_br, sc2_wt), = params["sc_convs"]        # exactly one extra conv (L=2)
  fc1_wr, fc1_br, fc1_wt = params["fc_conv1"]
  (fc2_wr, fc2_br, fc2_wt), = params["fc_convs"]
  w1, b1 = params["lin1"]
  w2, b2 = params["lin2"]
  w3, b3 = params["lin3"]
  hidden = w2.shape[0]
  num_classes = w3.shape[1]

  operands = (
      sc_x, sc_adj_norm, fc_x, fc_adj_norm, bmat_mean, bmat_add,
      sc1_wr, sc1_br, sc1_wt, sc2_wr, sc2_br, sc2_wt,
      fc1_wr, fc1_br, fc1_wt, fc2_wr, fc2_br, fc2_wt,
      w1, b1, w2, b2, w3, b3,
  )

  # Advisory cost estimate for XLA scheduling around the custom call.
  flops = (
      # SC / FC layer 1: adj@x + two weight dots
      2 * n * n * f_sc + 4 * n * f_sc * hidden
      + 2 * n * n * f_fc + 4 * n * f_fc * hidden
      # SC / FC layer 2
      + 2 * (2 * n * n * hidden + 4 * n * hidden * hidden)
      # 4 global pools
      + 4 * 2 * g * n * hidden
      # head
      + 2 * g * (4 * hidden) * hidden
      + 2 * g * hidden * (hidden // 2)
      + 2 * g * (hidden // 2) * num_classes
  )
  bytes_accessed = sum(int(a.size) * 4 for a in operands) + g * num_classes * 4
  cost = pl.CostEstimate(flops=flops,
                         transcendentals=g * (num_classes + 1),
                         bytes_accessed=bytes_accessed)

  return pl.pallas_call(
      _asap_fused_kernel,
      out_shape=jax.ShapeDtypeStruct((g, num_classes), jnp.float32),
      in_specs=_vmem_specs(len(operands)),
      out_specs=pl.BlockSpec(memory_space=pltpu.MemorySpace.VMEM),
      cost_estimate=cost,
  )(*operands)


# ---------------------------------------------------------------------------
# Glue: dense graph / batch construction (plain JAX, done once outside the kernel)
# ---------------------------------------------------------------------------

def build_dense_graph(edge_index, num_nodes):
  """Returns the row-normalized adjacency (deg_inv folded in): adj_norm[i, j] = 1/deg(i)
  if edge j->i exists, 0 otherwise (isolated dst rows are all-zero, matching PyG mean)."""
  src, dst = edge_index[0], edge_index[1]
  adj = jnp.zeros((num_nodes, num_nodes), jnp.float32).at[dst, src].add(1.0)
  cnt = jnp.zeros((num_nodes,), jnp.float32).at[dst].add(1.0)
  deg_inv = jnp.where(cnt > 0, 1.0 / jnp.maximum(cnt, 1.0), 0.0).reshape(num_nodes, 1)
  return adj * deg_inv


def build_batch_matrices(batch, num_graphs):
  """Returns (mean-pool matrix, add-pool matrix), both [G, N], scales folded in."""
  num_nodes = batch.shape[0]
  bmat = jnp.zeros((num_graphs, num_nodes), jnp.float32).at[
      batch, jnp.arange(num_nodes)].set(1.0)
  cnt = bmat.sum(axis=1, keepdims=True)
  mean_scale = jnp.where(cnt > 0, 1.0 / jnp.maximum(cnt, 1.0), 0.0)
  return bmat * mean_scale, bmat


# ---------------------------------------------------------------------------
# Parameter initialisation (deterministic, synthetic)
# ---------------------------------------------------------------------------

def _init_linear(key, fan_in, fan_out, bias=True):
  kw, kb = jax.random.split(key)
  w = jax.random.normal(kw, (fan_in, fan_out), jnp.float32) / jnp.sqrt(jnp.float32(fan_in))
  if bias:
    b = 0.01 * jax.random.normal(kb, (1, fan_out), jnp.float32)
    return w, b
  return w


def _init_graphconv(key, fan_in, fan_out):
  k1, k2 = jax.random.split(key)
  w_rel, b_rel = _init_linear(k1, fan_in, fan_out, bias=True)   # lin_rel has bias
  w_root = _init_linear(k2, fan_in, fan_out, bias=False)        # lin_root has no bias
  return (w_rel, b_rel, w_root)


def init_asap_params(key, sc_features, fc_features, hidden, num_layers, num_classes):
  keys = jax.random.split(key, 16)
  params = {
      "sc_conv1": _init_graphconv(keys[0], sc_features, hidden),
      "sc_convs": [_init_graphconv(keys[1 + i], hidden, hidden)
                   for i in range(num_layers - 1)],
      "fc_conv1": _init_graphconv(keys[6], fc_features, hidden),
      "fc_convs": [_init_graphconv(keys[7 + i], hidden, hidden)
                   for i in range(num_layers - 1)],
      "lin1": _init_linear(keys[12], num_layers * hidden * 2, hidden),
      "lin2": _init_linear(keys[13], hidden, hidden // 2),
      "lin3": _init_linear(keys[14], hidden // 2, num_classes),
  }
  return params


# ---------------------------------------------------------------------------
# ASAP forward (num_layers=2 config: ASAPooling branch is statically dead)
# ---------------------------------------------------------------------------

@functools.partial(jax.jit)
def asap_forward(params, sc_x, sc_adj_norm, fc_x, fc_adj_norm, bmat_mean, bmat_add):
  return asap_fused_call(params, sc_x, sc_adj_norm, fc_x, fc_adj_norm,
                         bmat_mean, bmat_add)


# ---------------------------------------------------------------------------
# Example graph construction
# ---------------------------------------------------------------------------

def make_edges(num_graphs, nodes_per_graph, step):
  src, dst = [], []
  for g in range(num_graphs):
    base = g * nodes_per_graph
    for n in range(nodes_per_graph):
      u = base + n
      v = base + (n + step) % nodes_per_graph
      src += [u, v]
      dst += [v, u]
  return jnp.array([src, dst], dtype=jnp.int32)


if __name__ == "__main__":
  # Small synthetic config (mirrors args.*):
  NUM_CLASSES = 2
  SC_FEATURES = 16
  FC_FEATURES = 16
  HIDDEN = 32
  NUM_LAYERS = 2     # -> ASAPooling branch is never executed by the reference forward
  DROPOUT = 0.0      # -> F.dropout is identity

  NUM_GRAPHS = 2
  NODES_PER_GRAPH = 8
  N = NUM_GRAPHS * NODES_PER_GRAPH

  key = jax.random.PRNGKey(0)
  k_params, k_sc, k_fc = jax.random.split(key, 3)

  params = init_asap_params(k_params, SC_FEATURES, FC_FEATURES,
                            HIDDEN, NUM_LAYERS, NUM_CLASSES)

  # data.x, data.edge_index, data.batch, data.fc_x, data.fc_edge_index
  sc_x = jax.random.normal(k_sc, (N, SC_FEATURES), jnp.float32)
  fc_x = jax.random.normal(k_fc, (N, FC_FEATURES), jnp.float32)
  sc_edge_index = make_edges(NUM_GRAPHS, NODES_PER_GRAPH, step=1)   # ring graph
  fc_edge_index = make_edges(NUM_GRAPHS, NODES_PER_GRAPH, step=2)   # skip-2 graph
  batch = jnp.repeat(jnp.arange(NUM_GRAPHS, dtype=jnp.int32), NODES_PER_GRAPH)

  sc_adj_norm = build_dense_graph(sc_edge_index, N)   # deg_inv folded in
  fc_adj_norm = build_dense_graph(fc_edge_index, N)
  bmat_mean, bmat_add = build_batch_matrices(batch, NUM_GRAPHS)  # scales folded in

  out = asap_forward(params, sc_x, sc_adj_norm, fc_x, fc_adj_norm, bmat_mean, bmat_add)
  out = jax.block_until_ready(out)

  assert out.shape == (NUM_GRAPHS, NUM_CLASSES)
  # log_softmax rows must exponentiate-sum to 1
  assert bool(jnp.allclose(jnp.exp(out).sum(axis=-1), 1.0, atol=1e-5))
  print("KERNEL_OK")
</pallas_src>

<mosaic_0001>
module attributes {stable_mosaic.version = 11 : i64} {
  func.func @_asap_fused_kernel(%arg0: memref<16x16xf32, #tpu.memory_space<vmem>>, %arg1: memref<16x16xf32, #tpu.memory_space<vmem>>, %arg2: memref<16x16xf32, #tpu.memory_space<vmem>>, %arg3: memref<16x16xf32, #tpu.memory_space<vmem>>, %arg4: memref<2x16xf32, #tpu.memory_space<vmem>>, %arg5: memref<2x16xf32, #tpu.memory_space<vmem>>, %arg6: memref<16x32xf32, #tpu.memory_space<vmem>>, %arg7: memref<1x32xf32, #tpu.memory_space<vmem>>, %arg8: memref<16x32xf32, #tpu.memory_space<vmem>>, %arg9: memref<32x32xf32, #tpu.memory_space<vmem>>, %arg10: memref<1x32xf32, #tpu.memory_space<vmem>>, %arg11: memref<32x32xf32, #tpu.memory_space<vmem>>, %arg12: memref<16x32xf32, #tpu.memory_space<vmem>>, %arg13: memref<1x32xf32, #tpu.memory_space<vmem>>, %arg14: memref<16x32xf32, #tpu.memory_space<vmem>>, %arg15: memref<32x32xf32, #tpu.memory_space<vmem>>, %arg16: memref<1x32xf32, #tpu.memory_space<vmem>>, %arg17: memref<32x32xf32, #tpu.memory_space<vmem>>, %arg18: memref<128x32xf32, #tpu.memory_space<vmem>>, %arg19: memref<1x32xf32, #tpu.memory_space<vmem>>, %arg20: memref<32x16xf32, #tpu.memory_space<vmem>>, %arg21: memref<1x16xf32, #tpu.memory_space<vmem>>, %arg22: memref<16x2xf32, #tpu.memory_space<vmem>>, %arg23: memref<1x2xf32, #tpu.memory_space<vmem>>, %arg24: memref<2x2xf32, #tpu.memory_space<vmem>>) attributes {dimension_semantics = [], scalar_prefetch = 0 : i64, scratch_operands = 0 : i64, tpu.core_type = #tpu.core_type<tc>} {
    %c0 = arith.constant 0 : index
    %c0_0 = arith.constant 0 : index
    %0 = vector.load %arg1[%c0, %c0_0] : memref<16x16xf32, #tpu.memory_space<vmem>>, vector<16x16xf32>
    %c0_1 = arith.constant 0 : index
    %c0_2 = arith.constant 0 : index
    %1 = vector.load %arg4[%c0_1, %c0_2] : memref<2x16xf32, #tpu.memory_space<vmem>>, vector<2x16xf32>
    %c0_3 = arith.constant 0 : index
    %c0_4 = arith.constant 0 : index
    %2 = vector.load %arg0[%c0_3, %c0_4] : memref<16x16xf32, #tpu.memory_space<vmem>>, vector<16x16xf32>
    %cst = arith.constant dense<0.000000e+00> : vector<16x16xf32>
    %3 = tpu.matmul %0, %2, %cst {dimension_numbers = #tpu.dot_dimension_numbers<[1], [0], [0], [1], [0, 0, 1, 1], [], []>} : vector<16x16xf32>, vector<16x16xf32>, vector<16x16xf32> -> vector<16x16xf32>
    %c0_5 = arith.constant 0 : index
    %c0_6 = arith.constant 0 : index
    %4 = vector.load %arg6[%c0_5, %c0_6] : memref<16x32xf32, #tpu.memory_space<vmem>>, vector<16x32xf32>
    %cst_7 = arith.constant dense<0.000000e+00> : vector<16x32xf32>
    %5 = tpu.matmul %3, %4, %cst_7 {dimension_numbers = #tpu.dot_dimension_numbers<[1], [0], [0], [1], [0, 0, 1, 1], [], []>} : vector<16x16xf32>, vector<16x32xf32>, vector<16x32xf32> -> vector<16x32xf32>
    %c0_8 = arith.constant 0 : index
    %c0_9 = arith.constant 0 : index
    %6 = vector.load %arg7[%c0_8, %c0_9] : memref<1x32xf32, #tpu.memory_space<vmem>>, vector<1x32xf32>
    %7 = vector.broadcast %6 : vector<1x32xf32> to vector<16x32xf32>
    %8 = arith.addf %5, %7 : vector<16x32xf32>
    %c0_10 = arith.constant 0 : index
    %c0_11 = arith.constant 0 : index
    %9 = vector.load %arg8[%c0_10, %c0_11] : memref<16x32xf32, #tpu.memory_space<vmem>>, vector<16x32xf32>
    %cst_12 = arith.constant dense<0.000000e+00> : vector<16x32xf32>
    %10 = tpu.matmul %2, %9, %cst_12 {dimension_numbers = #tpu.dot_dimension_numbers<[1], [0], [0], [1], [0, 0, 1, 1], [], []>} : vector<16x16xf32>, vector<16x32xf32>, vector<16x32xf32> -> vector<16x32xf32>
    %11 = arith.addf %8, %10 : vector<16x32xf32>
    %cst_13 = arith.constant 0.000000e+00 : f32
    %12 = vector.broadcast %cst_13 : f32 to vector<16x32xf32>
    %13 = arith.maximumf %11, %12 : vector<16x32xf32>
    %cst_14 = arith.constant dense<0.000000e+00> : vector<2x32xf32>
    %14 = tpu.matmul %1, %13, %cst_14 {dimension_numbers = #tpu.dot_dimension_numbers<[1], [0], [0], [1], [0, 0, 1, 1], [], []>} : vector<2x16xf32>, vector<16x32xf32>, vector<2x32xf32> -> vector<2x32xf32>
    %cst_15 = arith.constant dense<0.000000e+00> : vector<16x32xf32>
    %15 = tpu.matmul %0, %13, %cst_15 {dimension_numbers = #tpu.dot_dimension_numbers<[1], [0], [0], [1], [0, 0, 1, 1], [], []>} : vector<16x16xf32>, vector<16x32xf32>, vector<16x32xf32> -> vector<16x32xf32>
    %c0_16 = arith.constant 0 : index
    %c0_17 = arith.constant 0 : index
    %16 = vector.load %arg9[%c0_16, %c0_17] : memref<32x32xf32, #tpu.memory_space<vmem>>, vector<32x32xf32>
    %cst_18 = arith.constant dense<0.000000e+00> : vector<16x32xf32>
    %17 = tpu.matmul %15, %16, %cst_18 {dimension_numbers = #tpu.dot_dimension_numbers<[1], [0], [0], [1], [0, 0, 1, 1], [], []>} : vector<16x32xf32>, vector<32x32xf32>, vector<16x32xf32> -> vector<16x32xf32>
    %c0_19 = arith.constant 0 : index
    %c0_20 = arith.constant 0 : index
    %18 = vector.load %arg10[%c0_19, %c0_20] : memref<1x32xf32, #tpu.memory_space<vmem>>, vector<1x32xf32>
    %19 = vector.broadcast %18 : vector<1x32xf32> to vector<16x32xf32>
    %20 = arith.addf %17, %19 : vector<16x32xf32>
    %c0_21 = arith.constant 0 : index
    %c0_22 = arith.constant 0 : index
    %21 = vector.load %arg11[%c0_21, %c0_22] : memref<32x32xf32, #tpu.memory_space<vmem>>, vector<32x32xf32>
    %cst_23 = arith.constant dense<0.000000e+00> : vector<16x32xf32>
    %22 = tpu.matmul %13, %21, %cst_23 {dimension_numbers = #tpu.dot_dimension_numbers<[1], [0], [0], [1], [0, 0, 1, 1], [], []>} : vector<16x32xf32>, vector<32x32xf32>, vector<16x32xf32> -> vector<16x32xf32>
    %23 = arith.addf %20, %22 : vector<16x32xf32>
    %cst_24 = arith.constant 0.000000e+00 : f32
    %24 = vector.broadcast %cst_24 : f32 to vector<16x32xf32>
    %25 = arith.maximumf %23, %24 : vector<16x32xf32>
    %cst_25 = arith.constant dense<0.000000e+00> : vector<2x32xf32>
    %26 = tpu.matmul %1, %25, %cst_25 {dimension_numbers = #tpu.dot_dimension_numbers<[1], [0], [0], [1], [0, 0, 1, 1], [], []>} : vector<2x16xf32>, vector<16x32xf32>, vector<2x32xf32> -> vector<2x32xf32>
    %c0_26 = arith.constant 0 : index
    %c0_27 = arith.constant 0 : index
    %27 = vector.load %arg3[%c0_26, %c0_27] : memref<16x16xf32, #tpu.memory_space<vmem>>, vector<16x16xf32>
    %c0_28 = arith.constant 0 : index
    %c0_29 = arith.constant 0 : index
    %28 = vector.load %arg5[%c0_28, %c0_29] : memref<2x16xf32, #tpu.memory_space<vmem>>, vector<2x16xf32>
    %c0_30 = arith.constant 0 : index
    %c0_31 = arith.constant 0 : index
    %29 = vector.load %arg2[%c0_30, %c0_31] : memref<16x16xf32, #tpu.memory_space<vmem>>, vector<16x16xf32>
    %cst_32 = arith.constant dense<0.000000e+00> : vector<16x16xf32>
    %30 = tpu.matmul %27, %29, %cst_32 {dimension_numbers = #tpu.dot_dimension_numbers<[1], [0], [0], [1], [0, 0, 1, 1], [], []>} : vector<16x16xf32>, vector<16x16xf32>, vector<16x16xf32> -> vector<16x16xf32>
    %c0_33 = arith.constant 0 : index
    %c0_34 = arith.constant 0 : index
    %31 = vector.load %arg12[%c0_33, %c0_34] : memref<16x32xf32, #tpu.memory_space<vmem>>, vector<16x32xf32>
    %cst_35 = arith.constant dense<0.000000e+00> : vector<16x32xf32>
    %32 = tpu.matmul %30, %31, %cst_35 {dimension_numbers = #tpu.dot_dimension_numbers<[1], [0], [0], [1], [0, 0, 1, 1], [], []>} : vector<16x16xf32>, vector<16x32xf32>, vector<16x32xf32> -> vector<16x32xf32>
    %c0_36 = arith.constant 0 : index
    %c0_37 = arith.constant 0 : index
    %33 = vector.load %arg13[%c0_36, %c0_37] : memref<1x32xf32, #tpu.memory_space<vmem>>, vector<1x32xf32>
    %34 = vector.broadcast %33 : vector<1x32xf32> to vector<16x32xf32>
    %35 = arith.addf %32, %34 : vector<16x32xf32>
    %c0_38 = arith.constant 0 : index
    %c0_39 = arith.constant 0 : index
    %36 = vector.load %arg14[%c0_38, %c0_39] : memref<16x32xf32, #tpu.memory_space<vmem>>, vector<16x32xf32>
    %cst_40 = arith.constant dense<0.000000e+00> : vector<16x32xf32>
    %37 = tpu.matmul %29, %36, %cst_40 {dimension_numbers = #tpu.dot_dimension_numbers<[1], [0], [0], [1], [0, 0, 1, 1], [], []>} : vector<16x16xf32>, vector<16x32xf32>, vector<16x32xf32> -> vector<16x32xf32>
    %38 = arith.addf %35, %37 : vector<16x32xf32>
    %cst_41 = arith.constant 0.000000e+00 : f32
    %39 = vector.broadcast %cst_41 : f32 to vector<16x32xf32>
    %40 = arith.maximumf %38, %39 : vector<16x32xf32>
    %cst_42 = arith.constant dense<0.000000e+00> : vector<2x32xf32>
    %41 = tpu.matmul %28, %40, %cst_42 {dimension_numbers = #tpu.dot_dimension_numbers<[1], [0], [0], [1], [0, 0, 1, 1], [], []>} : vector<2x16xf32>, vector<16x32xf32>, vector<2x32xf32> -> vector<2x32xf32>
    %cst_43 = arith.constant dense<0.000000e+00> : vector<16x32xf32>
    %42 = tpu.matmul %27, %40, %cst_43 {dimension_numbers = #tpu.dot_dimension_numbers<[1], [0], [0], [1], [0, 0, 1, 1], [], []>} : vector<16x16xf32>, vector<16x32xf32>, vector<16x32xf32> -> vector<16x32xf32>
    %c0_44 = arith.constant 0 : index
    %c0_45 = arith.constant 0 : index
    %43 = vector.load %arg15[%c0_44, %c0_45] : memref<32x32xf32, #tpu.memory_space<vmem>>, vector<32x32xf32>
    %cst_46 = arith.constant dense<0.000000e+00> : vector<16x32xf32>
    %44 = tpu.matmul %42, %43, %cst_46 {dimension_numbers = #tpu.dot_dimension_numbers<[1], [0], [0], [1], [0, 0, 1, 1], [], []>} : vector<16x32xf32>, vector<32x32xf32>, vector<16x32xf32> -> vector<16x32xf32>
    %c0_47 = arith.constant 0 : index
    %c0_48 = arith.constant 0 : index
    %45 = vector.load %arg16[%c0_47, %c0_48] : memref<1x32xf32, #tpu.memory_space<vmem>>, vector<1x32xf32>
    %46 = vector.broadcast %45 : vector<1x32xf32> to vector<16x32xf32>
    %47 = arith.addf %44, %46 : vector<16x32xf32>
    %c0_49 = arith.constant 0 : index
    %c0_50 = arith.constant 0 : index
    %48 = vector.load %arg17[%c0_49, %c0_50] : memref<32x32xf32, #tpu.memory_space<vmem>>, vector<32x32xf32>
    %cst_51 = arith.constant dense<0.000000e+00> : vector<16x32xf32>
    %49 = tpu.matmul %40, %48, %cst_51 {dimension_numbers = #tpu.dot_dimension_numbers<[1], [0], [0], [1], [0, 0, 1, 1], [], []>} : vector<16x32xf32>, vector<32x32xf32>, vector<16x32xf32> -> vector<16x32xf32>
    %50 = arith.addf %47, %49 : vector<16x32xf32>
    %cst_52 = arith.constant 0.000000e+00 : f32
    %51 = vector.broadcast %cst_52 : f32 to vector<16x32xf32>
    %52 = arith.maximumf %50, %51 : vector<16x32xf32>
    %cst_53 = arith.constant dense<0.000000e+00> : vector<2x32xf32>
    %53 = tpu.matmul %28, %52, %cst_53 {dimension_numbers = #tpu.dot_dimension_numbers<[1], [0], [0], [1], [0, 0, 1, 1], [], []>} : vector<2x16xf32>, vector<16x32xf32>, vector<2x32xf32> -> vector<2x32xf32>
    %c0_54 = arith.constant 0 : index
    %c0_55 = arith.constant 0 : index
    %54 = vector.load %arg18[%c0_54, %c0_55] : memref<128x32xf32, #tpu.memory_space<vmem>>, vector<32x32xf32>
    %cst_56 = arith.constant dense<0.000000e+00> : vector<2x32xf32>
    %55 = tpu.matmul %14, %54, %cst_56 {dimension_numbers = #tpu.dot_dimension_numbers<[1], [0], [0], [1], [0, 0, 1, 1], [], []>} : vector<2x32xf32>, vector<32x32xf32>, vector<2x32xf32> -> vector<2x32xf32>
    %c32 = arith.constant 32 : index
    %c0_57 = arith.constant 0 : index
    %56 = vector.load %arg18[%c32, %c0_57] : memref<128x32xf32, #tpu.memory_space<vmem>>, vector<32x32xf32>
    %cst_58 = arith.constant dense<0.000000e+00> : vector<2x32xf32>
    %57 = tpu.matmul %26, %56, %cst_58 {dimension_numbers = #tpu.dot_dimension_numbers<[1], [0], [0], [1], [0, 0, 1, 1], [], []>} : vector<2x32xf32>, vector<32x32xf32>, vector<2x32xf32> -> vector<2x32xf32>
    %58 = arith.addf %55, %57 : vector<2x32xf32>
    %c64 = arith.constant 64 : index
    %c0_59 = arith.constant 0 : index
    %59 = vector.load %arg18[%c64, %c0_59] : memref<128x32xf32, #tpu.memory_space<vmem>>, vector<32x32xf32>
    %cst_60 = arith.constant dense<0.000000e+00> : vector<2x32xf32>
    %60 = tpu.matmul %41, %59, %cst_60 {dimension_numbers = #tpu.dot_dimension_numbers<[1], [0], [0], [1], [0, 0, 1, 1], [], []>} : vector<2x32xf32>, vector<32x32xf32>, vector<2x32xf32> -> vector<2x32xf32>
    %61 = arith.addf %58, %60 : vector<2x32xf32>
    %c96 = arith.constant 96 : index
    %c0_61 = arith.constant 0 : index
    %62 = vector.load %arg18[%c96, %c0_61] : memref<128x32xf32, #tpu.memory_space<vmem>>, vector<32x32xf32>
    %cst_62 = arith.constant dense<0.000000e+00> : vector<2x32xf32>
    %63 = tpu.matmul %53, %62, %cst_62 {dimension_numbers = #tpu.dot_dimension_numbers<[1], [0], [0], [1], [0, 0, 1, 1], [], []>} : vector<2x32xf32>, vector<32x32xf32>, vector<2x32xf32> -> vector<2x32xf32>
    %64 = arith.addf %61, %63 : vector<2x32xf32>
    %c0_63 = arith.constant 0 : index
    %c0_64 = arith.constant 0 : index
    %65 = vector.load %arg19[%c0_63, %c0_64] : memref<1x32xf32, #tpu.memory_space<vmem>>, vector<1x32xf32>
    %66 = vector.broadcast %65 : vector<1x32xf32> to vector<2x32xf32>
    %67 = arith.addf %64, %66 : vector<2x32xf32>
    %cst_65 = arith.constant 0.000000e+00 : f32
    %68 = vector.broadcast %cst_65 : f32 to vector<2x32xf32>
    %69 = arith.maximumf %67, %68 : vector<2x32xf32>
    %c0_66 = arith.constant 0 : index
    %c0_67 = arith.constant 0 : index
    %70 = vector.load %arg20[%c0_66, %c0_67] : memref<32x16xf32, #tpu.memory_space<vmem>>, vector<32x16xf32>
    %cst_68 = arith.constant dense<0.000000e+00> : vector<2x16xf32>
    %71 = tpu.matmul %69, %70, %cst_68 {dimension_numbers = #tpu.dot_dimension_numbers<[1], [0], [0], [1], [0, 0, 1, 1], [], []>} : vector<2x32xf32>, vector<32x16xf32>, vector<2x16xf32> -> vector<2x16xf32>
    %c0_69 = arith.constant 0 : index
    %c0_70 = arith.constant 0 : index
    %72 = vector.load %arg21[%c0_69, %c0_70] : memref<1x16xf32, #tpu.memory_space<vmem>>, vector<1x16xf32>
    %73 = vector.broadcast %72 : vector<1x16xf32> to vector<2x16xf32>
    %74 = arith.addf %71, %73 : vector<2x16xf32>
    %cst_71 = arith.constant 0.000000e+00 : f32
    %75 = vector.broadcast %cst_71 : f32 to vector<2x16xf32>
    %76 = arith.maximumf %74, %75 : vector<2x16xf32>
    %c0_72 = arith.constant 0 : index
    %c0_73 = arith.constant 0 : index
    %77 = vector.load %arg22[%c0_72, %c0_73] : memref<16x2xf32, #tpu.memory_space<vmem>>, vector<16x2xf32>
    %cst_74 = arith.constant dense<0.000000e+00> : vector<2x2xf32>
    %78 = tpu.matmul %76, %77, %cst_74 {dimension_numbers = #tpu.dot_dimension_numbers<[1], [0], [0], [1], [0, 0, 1, 1], [], []>} : vector<2x16xf32>, vector<16x2xf32>, vector<2x2xf32> -> vector<2x2xf32>
    %c0_75 = arith.constant 0 : index
    %c0_76 = arith.constant 0 : index
    %79 = vector.load %arg23[%c0_75, %c0_76] : memref<1x2xf32, #tpu.memory_space<vmem>>, vector<1x2xf32>
    %80 = vector.broadcast %79 : vector<1x2xf32> to vector<2x2xf32>
    %81 = arith.addf %78, %80 : vector<2x2xf32>
    %cst_77 = arith.constant dense<0xFF800000> : vector<2xf32>
    %82 = vector.multi_reduction <maximumf>, %81, %cst_77 [1] : vector<2x2xf32> to vector<2xf32>
    %83 = vector.shape_cast %82 : vector<2xf32> to vector<2x1xf32>
    %84 = vector.broadcast %83 : vector<2x1xf32> to vector<2x2xf32>
    %85 = arith.subf %81, %84 : vector<2x2xf32>
    %86 = math.exp %85 : vector<2x2xf32>
    %cst_78 = arith.constant dense<0.000000e+00> : vector<2xf32>
    %87 = vector.multi_reduction <add>, %86, %cst_78 [1] : vector<2x2xf32> to vector<2xf32>
    %88 = vector.shape_cast %87 : vector<2xf32> to vector<2x1xf32>
    %89 = math.log %88 : vector<2x1xf32>
    %90 = arith.addf %83, %89 : vector<2x1xf32>
    %91 = vector.broadcast %90 : vector<2x1xf32> to vector<2x2xf32>
    %92 = arith.subf %81, %91 : vector<2x2xf32>
    %c0_79 = arith.constant 0 : index
    %c0_80 = arith.constant 0 : index
    %93 = vector.load %arg24[%c0_79, %c0_80] : memref<2x2xf32, #tpu.memory_space<vmem>>, vector<2x2xf32>
    tpu.vector_store %arg24[%c0_79, %c0_80], %92 {strides = array<i32>} : memref<2x2xf32, #tpu.memory_space<vmem>>, vector<2x2xf32>,
    return
  }
}

</mosaic_0001>

<llo_original>
// kernel: asap_forward.1
$region0: #{asap_forward.1}
  #allocation0 [shape = 'u32[]', space=smem, size = 0x4, offset = 0x4, fixed_abs, tag = 'smem constant byte address 0x4 - core index']
  #allocation1 [shape = 'u32[144,128]{1,0:T(1,128)}', space=vmem, size = 0x12000, scoped, tag = 'internal scratch']
  %s0 = inlined_call_operand.vmem [shape: f32[16,16], index: 0, kind: input, shape index: {}]
  %s1 = inlined_call_operand.vmem [shape: f32[16,16], index: 1, kind: input, shape index: {}]
  %s2 = inlined_call_operand.vmem [shape: f32[16,16], index: 2, kind: input, shape index: {}]
  %s3 = inlined_call_operand.vmem [shape: f32[16,16], index: 3, kind: input, shape index: {}]
  %s4 = inlined_call_operand.vmem [shape: f32[2,16], index: 4, kind: input, shape index: {}]
  %s5 = inlined_call_operand.vmem [shape: f32[2,16], index: 5, kind: input, shape index: {}]
  %s6 = inlined_call_operand.hbm [shape: f32[16,32], index: 6, kind: input, shape index: {}]
  %s7 = inlined_call_operand.vmem [shape: f32[1,32], index: 7, kind: input, shape index: {}]
  %s8 = inlined_call_operand.hbm [shape: f32[16,32], index: 8, kind: input, shape index: {}]
  %s9 = inlined_call_operand.vmem [shape: f32[32,32], index: 9, kind: input, shape index: {}]
  %s10 = inlined_call_operand.vmem [shape: f32[1,32], index: 10, kind: input, shape index: {}]
  %s11 = inlined_call_operand.vmem [shape: f32[32,32], index: 11, kind: input, shape index: {}]
  %s12 = inlined_call_operand.hbm [shape: f32[16,32], index: 12, kind: input, shape index: {}]
  %s13 = inlined_call_operand.hbm [shape: f32[1,32], index: 13, kind: input, shape index: {}]
  %s14 = inlined_call_operand.hbm [shape: f32[16,32], index: 14, kind: input, shape index: {}]
  %s15 = inlined_call_operand.vmem [shape: f32[32,32], index: 15, kind: input, shape index: {}]
  %s16 = inlined_call_operand.hbm [shape: f32[1,32], index: 16, kind: input, shape index: {}]
  %s17 = inlined_call_operand.vmem [shape: f32[32,32], index: 17, kind: input, shape index: {}]
  %s18 = inlined_call_operand.vmem [shape: f32[128,32], index: 18, kind: input, shape index: {}]
  %s19 = inlined_call_operand.hbm [shape: f32[1,32], index: 19, kind: input, shape index: {}]
  %s20 = inlined_call_operand.vmem [shape: f32[32,16], index: 20, kind: input, shape index: {}]
  %s21 = inlined_call_operand.hbm [shape: f32[1,16], index: 21, kind: input, shape index: {}]
  %s22 = inlined_call_operand.vmem [shape: f32[16,2], index: 22, kind: input, shape index: {}]
  %s23 = inlined_call_operand.hbm [shape: f32[1,2], index: 23, kind: input, shape index: {}]
  %s24 = inlined_call_operand.hbm [shape: f32[2,2], index: 24, kind: output, shape index: {}]
  %s25 = sld [smem:[#allocation0]]
  $region142: #{asap_forward.1} parent=0
    _
  %s27 = ssub.s32 1, %s25
  %s28 = scalar_select 0, %s27, %s25
  $region1: #{asap_forward.1} parent=0
    #allocation2 [shape = 'u8[8192]{0}', space=vmem, size = 0x2000, scoped, tag = 'input window, operand 6, single buffered']
    #allocation3 [shape = 's32[1]{0}', space=sflag, size = 0x4, scoped, tag = 'scoped memory for asap_forward.1']
    #allocation4 [shape = 's32[1]{0}', space=sflag, size = 0x4, scoped, tag = 'scoped memory for asap_forward.1']
    #allocation5 [shape = 'u8[8192]{0}', space=vmem, size = 0x2000, scoped, tag = 'input window, operand 8, single buffered']
    #allocation6 [shape = 's32[1]{0}', space=sflag, size = 0x4, scoped, tag = 'scoped memory for asap_forward.1']
    #allocation7 [shape = 'u8[8192]{0}', space=vmem, size = 0x2000, scoped, tag = 'input window, operand 12, single buffered']
    #allocation8 [shape = 'u8[512]{0}', space=vmem, size = 0x400, scoped, tag = 'input window, operand 13, single buffered']
    #allocation9 [shape = 's32[1]{0}', space=sflag, size = 0x4, scoped, tag = 'scoped memory for asap_forward.1']
    #allocation10 [shape = 'u8[8192]{0}', space=vmem, size = 0x2000, scoped, tag = 'input window, operand 14, single buffered']
    #allocation11 [shape = 'u8[512]{0}', space=vmem, size = 0x400, scoped, tag = 'input window, operand 16, single buffered']
    #allocation12 [shape = 's32[1]{0}', space=sflag, size = 0x4, scoped, tag = 'scoped memory for asap_forward.1']
    #allocation13 [shape = 'u8[512]{0}', space=vmem, size = 0x400, scoped, tag = 'input window, operand 19, single buffered']
    #allocation14 [shape = 'u8[512]{0}', space=vmem, size = 0x400, scoped, tag = 'input window, operand 21, single buffered']
    #allocation15 [shape = 's32[1]{0}', space=sflag, size = 0x4, scoped, tag = 'scoped memory for asap_forward.1']
    #allocation16 [shape = 'u8[512]{0}', space=vmem, size = 0x400, scoped, tag = 'input window, operand 23, single buffered']
    #allocation17 [shape = 'u8[1024]{0}', space=vmem, size = 0x400, scoped, tag = 'output window, operand 0, single buffered']
    %29 = vsyncpa [#allocation3], 0
    %30 = vsyncpa [#allocation6], 0
    %31 = vsyncpa [#allocation9], 0
    %32 = vsyncpa [#allocation12], 0
    %33 = vsyncpa [#allocation15], 0
    %34 = vsyncpa [#allocation4], 0
    // Predicated region
    $region2: #{asap_forward.1} parent=1 // pred_check
      _
    $region3: #{asap_forward.1} parent=1 // pred_check_branch
      %36 = sbr.rel (0) target = $region5
    $region4: #{asap_forward.1} parent=1 // pred_region
      _
    $region5: #{asap_forward.1} parent=1 // pred_fallthru
      _
    // Predicated region
    $region6: #{asap_forward.1} parent=1 // pred_check
      _
    $region7: #{asap_forward.1} parent=1 // pred_check_branch
      %38 = sbr.rel (0) target = $region9
    $region8: #{asap_forward.1} parent=1 // pred_region
      _
    $region9: #{asap_forward.1} parent=1 // pred_fallthru
      _
    // Predicated region
    $region10: #{asap_forward.1} parent=1 // pred_check
      _
    $region11: #{asap_forward.1} parent=1 // pred_check_branch
      %40 = sbr.rel (0) target = $region13
    $region12: #{asap_forward.1} parent=1 // pred_region
      _
    $region13: #{asap_forward.1} parent=1 // pred_fallthru
      _
    // Predicated region
    $region14: #{asap_forward.1} parent=1 // pred_check
      _
    $region15: #{asap_forward.1} parent=1 // pred_check_branch
      %42 = sbr.rel (0) target = $region17
    $region16: #{asap_forward.1} parent=1 // pred_region
      _
    $region17: #{asap_forward.1} parent=1 // pred_fallthru
      _
    // Predicated region
    $region18: #{asap_forward.1} parent=1 // pred_check
      _
    $region19: #{asap_forward.1} parent=1 // pred_check_branch
      %44 = sbr.rel (0) target = $region21
    $region20: #{asap_forward.1} parent=1 // pred_region
      _
    $region21: #{asap_forward.1} parent=1 // pred_fallthru
      _
    // Predicated region
    $region22: #{asap_forward.1} parent=1 // pred_check
      _
    $region23: #{asap_forward.1} parent=1 // pred_check_branch
      %46 = sbr.rel (0) target = $region25
    $region24: #{asap_forward.1} parent=1 // pred_region
      _
    $region25: #{asap_forward.1} parent=1 // pred_fallthru
      _
    // Predicated region
    $region26: #{asap_forward.1} parent=1 // pred_check
      _
    $region27: #{asap_forward.1} parent=1 // pred_check_branch
      %48 = sbr.rel (0) target = $region29
    $region28: #{asap_forward.1} parent=1 // pred_region
      %s50 = ssub.s32 256, 256
      %51 = vsyncadd [#allocation3], %s50
      %s52 = sshll.u32 [#allocation2], 4
      %s53 = int_to_ptr.vmem [resolvable:$true] %s52
      %58 = dma.hbm_to_vmem [thread:$0]  %s6, 256, %s53, [#allocation3], 128, 128, 8
    $region29: #{asap_forward.1} parent=1 // pred_fallthru
      _
    // Predicated region
    $region30: #{asap_forward.1} parent=1 // pred_check
      _
    $region31: #{asap_forward.1} parent=1 // pred_check_branch
      %60 = sbr.rel (0) target = $region33
    $region32: #{asap_forward.1} parent=1 // pred_region
      _
    $region33: #{asap_forward.1} parent=1 // pred_fallthru
      _
    // Predicated region
    $region34: #{asap_forward.1} parent=1 // pred_check
      _
    $region35: #{asap_forward.1} parent=1 // pred_check_branch
      %62 = sbr.rel (0) target = $region37
    $region36: #{asap_forward.1} parent=1 // pred_region
      %s64 = ssub.s32 256, 256
      %65 = vsyncadd [#allocation6], %s64
      %s66 = sshll.u32 [#allocation5], 4
      %s67 = int_to_ptr.vmem [resolvable:$true] %s66
      %72 = dma.hbm_to_vmem [thread:$0]  %s8, 256, %s67, [#allocation6], 128, 128, 8
    $region37: #{asap_forward.1} parent=1 // pred_fallthru
      _
    // Predicated region
    $region38: #{asap_forward.1} parent=1 // pred_check
      _
    $region39: #{asap_forward.1} parent=1 // pred_check_branch
      %74 = sbr.rel (0) target = $region41
    $region40: #{asap_forward.1} parent=1 // pred_region
      _
    $region41: #{asap_forward.1} parent=1 // pred_fallthru
      _
    // Predicated region
    $region42: #{asap_forward.1} parent=1 // pred_check
      _
    $region43: #{asap_forward.1} parent=1 // pred_check_branch
      %76 = sbr.rel (0) target = $region45
    $region44: #{asap_forward.1} parent=1 // pred_region
      _
    $region45: #{asap_forward.1} parent=1 // pred_fallthru
      _
    // Predicated region
    $region46: #{asap_forward.1} parent=1 // pred_check
      _
    $region47: #{asap_forward.1} parent=1 // pred_check_branch
      %78 = sbr.rel (0) target = $region49
    $region48: #{asap_forward.1} parent=1 // pred_region
      _
    $region49: #{asap_forward.1} parent=1 // pred_fallthru
      _
    // Predicated region
    $region50: #{asap_forward.1} parent=1 // pred_check
      _
    $region51: #{asap_forward.1} parent=1 // pred_check_branch
      %80 = sbr.rel (0) target = $region53
    $region52: #{asap_forward.1} parent=1 // pred_region
      %s82 = ssub.s32 256, 256
      %83 = vsyncadd [#allocation6], %s82
      %s84 = sshll.u32 [#allocation7], 4
      %s85 = int_to_ptr.vmem [resolvable:$true] %s84
      %90 = dma.hbm_to_vmem [thread:$0]  %s12, 256, %s85, [#allocation6], 128, 128, 8
    $region53: #{asap_forward.1} parent=1 // pred_fallthru
      _
    // Predicated region
    $region54: #{asap_forward.1} parent=1 // pred_check
      _
    $region55: #{asap_forward.1} parent=1 // pred_check_branch
      %92 = sbr.rel (0) target = $region57
    $region56: #{asap_forward.1} parent=1 // pred_region
      %s94 = ssub.s32 16, 16
      %95 = vsyncadd [#allocation9], %s94
      %s97 = sshll.u32 [#allocation8], 4
      %s98 = int_to_ptr.vmem [resolvable:$true] %s97
      %100 = dma.hbm_to_vmem [thread:$0]  %s13, 16, %s98, [#allocation9]
    $region57: #{asap_forward.1} parent=1 // pred_fallthru
      _
    // Predicated region
    $region58: #{asap_forward.1} parent=1 // pred_check
      _
    $region59: #{asap_forward.1} parent=1 // pred_check_branch
      %102 = sbr.rel (0) target = $region61
    $region60: #{asap_forward.1} parent=1 // pred_region
      %s104 = ssub.s32 256, 256
      %105 = vsyncadd [#allocation9], %s104
      %s106 = sshll.u32 [#allocation10], 4
      %s107 = int_to_ptr.vmem [resolvable:$true] %s106
      %112 = dma.hbm_to_vmem [thread:$0]  %s14, 256, %s107, [#allocation9], 128, 128, 8
    $region61: #{asap_forward.1} parent=1 // pred_fallthru
      _
    // Predicated region
    $region62: #{asap_forward.1} parent=1 // pred_check
      _
    $region63: #{asap_forward.1} parent=1 // pred_check_branch
      %114 = sbr.rel (0) target = $region65
    $region64: #{asap_forward.1} parent=1 // pred_region
      _
    $region65: #{asap_forward.1} parent=1 // pred_fallthru
      _
    // Predicated region
    $region66: #{asap_forward.1} parent=1 // pred_check
      _
    $region67: #{asap_forward.1} parent=1 // pred_check_branch
      %116 = sbr.rel (0) target = $region69
    $region68: #{asap_forward.1} parent=1 // pred_region
      %s118 = ssub.s32 16, 16
      %119 = vsyncadd [#allocation12], %s118
      %s121 = sshll.u32 [#allocation11], 4
      %s122 = int_to_ptr.vmem [resolvable:$true] %s121
      %124 = dma.hbm_to_vmem [thread:$0]  %s16, 16, %s122, [#allocation12]
    $region69: #{asap_forward.1} parent=1 // pred_fallthru
      _
    // Predicated region
    $region70: #{asap_forward.1} parent=1 // pred_check
      _
    $region71: #{asap_forward.1} parent=1 // pred_check_branch
      %126 = sbr.rel (0) target = $region73
    $region72: #{asap_forward.1} parent=1 // pred_region
      _
    $region73: #{asap_forward.1} parent=1 // pred_fallthru
      _
    // Predicated region
    $region74: #{asap_forward.1} parent=1 // pred_check
      _
    $region75: #{asap_forward.1} parent=1 // pred_check_branch
      %128 = sbr.rel (0) target = $region77
    $region76: #{asap_forward.1} parent=1 // pred_region
      _
    $region77: #{asap_forward.1} parent=1 // pred_fallthru
      _
    // Predicated region
    $region78: #{asap_forward.1} parent=1 // pred_check
      _
    $region79: #{asap_forward.1} parent=1 // pred_check_branch
      %130 = sbr.rel (0) target = $region81
    $region80: #{asap_forward.1} parent=1 // pred_region
      %s132 = ssub.s32 16, 16
      %133 = vsyncadd [#allocation12], %s132
      %s135 = sshll.u32 [#allocation13], 4
      %s136 = int_to_ptr.vmem [resolvable:$true] %s135
      %138 = dma.hbm_to_vmem [thread:$0]  %s19, 16, %s136, [#allocation12]
    $region81: #{asap_forward.1} parent=1 // pred_fallthru
      _
    // Predicated region
    $region82: #{asap_forward.1} parent=1 // pred_check
      _
    $region83: #{asap_forward.1} parent=1 // pred_check_branch
      %140 = sbr.rel (0) target = $region85
    $region84: #{asap_forward.1} parent=1 // pred_region
      _
    $region85: #{asap_forward.1} parent=1 // pred_fallthru
      _
    // Predicated region
    $region86: #{asap_forward.1} parent=1 // pred_check
      _
    $region87: #{asap_forward.1} parent=1 // pred_check_branch
      %142 = sbr.rel (0) target = $region89
    $region88: #{asap_forward.1} parent=1 // pred_region
      %s144 = ssub.s32 16, 16
      %145 = vsyncadd [#allocation15], %s144
      %s147 = sshll.u32 [#allocation14], 4
      %s148 = int_to_ptr.vmem [resolvable:$true] %s147
      %150 = dma.hbm_to_vmem [thread:$0]  %s21, 16, %s148, [#allocation15]
    $region89: #{asap_forward.1} parent=1 // pred_fallthru
      _
    // Predicated region
    $region90: #{asap_forward.1} parent=1 // pred_check
      _
    $region91: #{asap_forward.1} parent=1 // pred_check_branch
      %152 = sbr.rel (0) target = $region93
    $region92: #{asap_forward.1} parent=1 // pred_region
      _
    $region93: #{asap_forward.1} parent=1 // pred_fallthru
      _
    // Predicated region
    $region94: #{asap_forward.1} parent=1 // pred_check
      _
    $region95: #{asap_forward.1} parent=1 // pred_check_branch
      %154 = sbr.rel (0) target = $region97
    $region96: #{asap_forward.1} parent=1 // pred_region
      %s156 = ssub.s32 16, 16
      %157 = vsyncadd [#allocation15], %s156
      %s159 = sshll.u32 [#allocation16], 4
      %s160 = int_to_ptr.vmem [resolvable:$true] %s159
      %162 = dma.hbm_to_vmem [thread:$0]  %s23, 16, %s160, [#allocation15]
    $region97: #{asap_forward.1} parent=1 // pred_fallthru
      _
    // Predicated region
    $region98: #{asap_forward.1} parent=1 // pred_check
      _
    $region99: #{asap_forward.1} parent=1 // pred_check_branch
      %164 = sbr.rel (0) target = $region101
    $region100: #{asap_forward.1} parent=1 // pred_region
      %165 = dma.done [#allocation3], 256
    $region101: #{asap_forward.1} parent=1 // pred_fallthru
      _
    // Predicated region
    $region102: #{asap_forward.1} parent=1 // pred_check
      _
    $region103: #{asap_forward.1} parent=1 // pred_check_branch
      %167 = sbr.rel (0) target = $region105
    $region104: #{asap_forward.1} parent=1 // pred_region
      %168 = dma.done [#allocation6], 256
    $region105: #{asap_forward.1} parent=1 // pred_fallthru
      _
    // Predicated region
    $region106: #{asap_forward.1} parent=1 // pred_check
      _
    $region107: #{asap_forward.1} parent=1 // pred_check_branch
      %170 = sbr.rel (0) target = $region109
    $region108: #{asap_forward.1} parent=1 // pred_region
      %171 = dma.done [#allocation6], 256
    $region109: #{asap_forward.1} parent=1 // pred_fallthru
      _
    // Predicated region
    $region110: #{asap_forward.1} parent=1 // pred_check
      _
    $region111: #{asap_forward.1} parent=1 // pred_check_branch
      %173 = sbr.rel (0) target = $region113
    $region112: #{asap_forward.1} parent=1 // pred_region
      %174 = dma.done [#allocation9], 16
    $region113: #{asap_forward.1} parent=1 // pred_fallthru
      _
    // Predicated region
    $region114: #{asap_forward.1} parent=1 // pred_check
      _
    $region115: #{asap_forward.1} parent=1 // pred_check_branch
      %176 = sbr.rel (0) target = $region117
    $region116: #{asap_forward.1} parent=1 // pred_region
      %177 = dma.done [#allocation9], 256
    $region117: #{asap_forward.1} parent=1 // pred_fallthru
      _
    // Predicated region
    $region118: #{asap_forward.1} parent=1 // pred_check
      _
    $region119: #{asap_forward.1} parent=1 // pred_check_branch
      %179 = sbr.rel (0) target = $region121
    $region120: #{asap_forward.1} parent=1 // pred_region
      %180 = dma.done [#allocation12], 16
    $region121: #{asap_forward.1} parent=1 // pred_fallthru
      _
    // Predicated region
    $region122: #{asap_forward.1} parent=1 // pred_check
      _
    $region123: #{asap_forward.1} parent=1 // pred_check_branch
      %182 = sbr.rel (0) target = $region125
    $region124: #{asap_forward.1} parent=1 // pred_region
      %183 = dma.done [#allocation12], 16
    $region125: #{asap_forward.1} parent=1 // pred_fallthru
      _
    // Predicated region
    $region126: #{asap_forward.1} parent=1 // pred_check
      _
    $region127: #{asap_forward.1} parent=1 // pred_check_branch
      %185 = sbr.rel (0) target = $region129
    $region128: #{asap_forward.1} parent=1 // pred_region
      %186 = dma.done [#allocation15], 16
    $region129: #{asap_forward.1} parent=1 // pred_fallthru
      _
    // Predicated region
    $region130: #{asap_forward.1} parent=1 // pred_check
      _
    $region131: #{asap_forward.1} parent=1 // pred_check_branch
      %188 = sbr.rel (0) target = $region133
    $region132: #{asap_forward.1} parent=1 // pred_region
      %189 = dma.done [#allocation15], 16
    $region133: #{asap_forward.1} parent=1 // pred_fallthru
      _
    %v190 = vld [vmem:[%s1] sm:$0xff]
    %v191 = vld [vmem:[%s1 + $0x8] sm:$0xff]
    %v192 = vld [vmem:[%s4] sm:$0x3]
    %v193 = vld [vmem:[%s0] sm:$0xff]
    %v194 = vld [vmem:[%s0 + $0x8] sm:$0xff]
    %vm195 = vcmask 130048
    %v197 = vsel %vm195, %v190, 0
    %v200 = vsel %vm195, %v191, 0
    %202 = vmatprep.subr.mxu0 0.0
    %203 = vmatpush1.msra.mxu0 0.0
    %204 = vmatprep.subr.mxu0 0.0
    %205 = vmatpush1.msra.mxu0 0.0
    %206 = vmatprep.subr.mxu0 0.0
    %207 = vmatpush1.msra.mxu0 0.0
    %208 = vmatprep.subr.mxu0 0.0
    %209 = vmatpush1.msra.mxu0 0.0
    %210 = vmatprep.subr.mxu0 0.0
    %211 = vmatpush1.msra.mxu0 0.0
    %212 = vmatprep.subr.mxu0 0.0
    %213 = vmatpush1.msra.mxu0 0.0
    %214 = vmatprep.subr.mxu0 0.0
    %215 = vmatpush1.msra.mxu0 0.0
    %216 = vmatprep.subr.mxu0 0.0
    %217 = vmatpush1.msra.mxu0 0.0
    %218 = vmatprep.subr.mxu0 0.0
    %219 = vmatpush1.msra.mxu0 0.0
    %220 = vmatprep.subr.mxu0 0.0
    %221 = vmatpush1.msra.mxu0 0.0
    %222 = vmatprep.subr.mxu0 0.0
    %223 = vmatpush1.msra.mxu0 0.0
    %224 = vmatprep.subr.mxu0 0.0
    %225 = vmatpush1.msra.mxu0 0.0
    %226 = vmatprep.subr.mxu0 0.0
    %227 = vmatpush1.msra.mxu0 0.0
    %228 = vmatprep.subr.mxu0 0.0
    %229 = vmatpush1.msra.mxu0 0.0
    %230 = vmatprep.subr.mxu0 0.0
    %231 = vmatpush1.msra.mxu0 %v194
    %232 = vmatprep.subr.mxu0 0.0
    %233 = vmatpush1.msra.mxu0 %v193
    %234 = vmatprep.subr.mxu0 0.0
    %235 = vmatpush2.msra.mxu0 0.0
    %236 = vmatprep.subr.mxu0 0.0
    %237 = vmatpush2.msra.mxu0 0.0
    %238 = vmatprep.subr.mxu0 0.0
    %239 = vmatpush2.msra.mxu0 0.0
    %240 = vmatprep.subr.mxu0 0.0
    %241 = vmatpush2.msra.mxu0 0.0
    %242 = vmatprep.subr.mxu0 0.0
    %243 = vmatpush2.msra.mxu0 0.0
    %244 = vmatprep.subr.mxu0 0.0
    %245 = vmatpush2.msra.mxu0 0.0
    %246 = vmatprep.subr.mxu0 0.0
    %247 = vmatpush2.msra.mxu0 0.0
    %248 = vmatprep.subr.mxu0 0.0
    %249 = vmatpush2.msra.mxu0 0.0
    %250 = vmatprep.subr.mxu0 0.0
    %251 = vmatpush2.msra.mxu0 0.0
    %252 = vmatprep.subr.mxu0 0.0
    %253 = vmatpush2.msra.mxu0 0.0
    %254 = vmatprep.subr.mxu0 0.0
    %255 = vmatpush2.msra.mxu0 0.0
    %256 = vmatprep.subr.mxu0 0.0
    %257 = vmatpush2.msra.mxu0 0.0
    %258 = vmatprep.subr.mxu0 0.0
    %259 = vmatpush2.msra.mxu0 0.0
    %260 = vmatprep.subr.mxu0 0.0
    %261 = vmatpush2.msra.mxu0 0.0
    %262 = vmatprep.subr.mxu0 0.0
    %263 = vmatpush2.msra.mxu0 0.0
    %264 = vmatprep.subr.mxu0 0.0
    %265 = vmatpush2.msra.mxu0 0.0
    %266 = vmatprep.mubr.f32.mxu0 0.0
    %267 = vmatmul.mubr.f32.gmra.mxu0 %v197
    %v268 = vpop.f32.mrf.mxu0
    %v269 = vadd.f32 0.0, %v268
    %v270 = vpop.f32.mrf.mxu0
    %271 = vmatprep.mubr.f32.mxu0 0.0
    %272 = vmatmul.mubr.f32.gmra.mxu0 %v200
    %v273 = vpop.f32.mrf.mxu0
    %v274 = vadd.f32 0.0, %v273
    %v275 = vpop.f32.mrf.mxu0
    %276 = vdwg.mxu0
    %v277 = vld [vmem:[#allocation2] sm:$0xff]
    %v278 = vld [vmem:[#allocation2 + $0x8] sm:$0xff]
    %v279 = vld [vmem:[%s7] sm:$0x1]
    %v281 = vlaneseq
    %v282 = vshrl.u32 %v281, 7
    %v283 = vsub.s32 0, %v282
    %v284 = vrot.slane %v279, %v283
    %v287 = vsel %vm195, %v269, 0
    %v290 = vsel %vm195, %v274, 0
    %292 = vmatprep.subr.mxu0 0.0
    %293 = vmatpush1.msra.mxu0 0.0
    %294 = vmatprep.subr.mxu0 0.0
    %295 = vmatpush1.msra.mxu0 0.0
    %296 = vmatprep.subr.mxu0 0.0
    %297 = vmatpush1.msra.mxu0 0.0
    %298 = vmatprep.subr.mxu0 0.0
    %299 = vmatpush1.msra.mxu0 0.0
    %300 = vmatprep.subr.mxu0 0.0
    %301 = vmatpush1.msra.mxu0 0.0
    %302 = vmatprep.subr.mxu0 0.0
    %303 = vmatpush1.msra.mxu0 0.0
    %304 = vmatprep.subr.mxu0 0.0
    %305 = vmatpush1.msra.mxu0 0.0
    %306 = vmatprep.subr.mxu0 0.0
    %307 = vmatpush1.msra.mxu0 0.0
    %308 = vmatprep.subr.mxu0 0.0
    %309 = vmatpush1.msra.mxu0 0.0
    %310 = vmatprep.subr.mxu0 0.0
    %311 = vmatpush1.msra.mxu0 0.0
    %312 = vmatprep.subr.mxu0 0.0
    %313 = vmatpush1.msra.mxu0 0.0
    %314 = vmatprep.subr.mxu0 0.0
    %315 = vmatpush1.msra.mxu0 0.0
    %316 = vmatprep.subr.mxu0 0.0
    %317 = vmatpush1.msra.mxu0 0.0
    %318 = vmatprep.subr.mxu0 0.0
    %319 = vmatpush1.msra.mxu0 0.0
    %320 = vmatprep.subr.mxu0 0.0
    %321 = vmatpush1.msra.mxu0 %v278
    %322 = vmatprep.subr.mxu0 0.0
    %323 = vmatpush1.msra.mxu0 %v277
    %324 = vmatprep.subr.mxu0 0.0
    %325 = vmatpush2.msra.mxu0 0.0
    %326 = vmatprep.subr.mxu0 0.0
    %327 = vmatpush2.msra.mxu0 0.0
    %328 = vmatprep.subr.mxu0 0.0
    %329 = vmatpush2.msra.mxu0 0.0
    %330 = vmatprep.subr.mxu0 0.0
    %331 = vmatpush2.msra.mxu0 0.0
    %332 = vmatprep.subr.mxu0 0.0
    %333 = vmatpush2.msra.mxu0 0.0
    %334 = vmatprep.subr.mxu0 0.0
    %335 = vmatpush2.msra.mxu0 0.0
    %336 = vmatprep.subr.mxu0 0.0
    %337 = vmatpush2.msra.mxu0 0.0
    %338 = vmatprep.subr.mxu0 0.0
    %339 = vmatpush2.msra.mxu0 0.0
    %340 = vmatprep.subr.mxu0 0.0
    %341 = vmatpush2.msra.mxu0 0.0
    %342 = vmatprep.subr.mxu0 0.0
    %343 = vmatpush2.msra.mxu0 0.0
    %344 = vmatprep.subr.mxu0 0.0
    %345 = vmatpush2.msra.mxu0 0.0
    %346 = vmatprep.subr.mxu0 0.0
    %347 = vmatpush2.msra.mxu0 0.0
    %348 = vmatprep.subr.mxu0 0.0
    %349 = vmatpush2.msra.mxu0 0.0
    %350 = vmatprep.subr.mxu0 0.0
    %351 = vmatpush2.msra.mxu0 0.0
    %352 = vmatprep.subr.mxu0 0.0
    %353 = vmatpush2.msra.mxu0 0.0
    %354 = vmatprep.subr.mxu0 0.0
    %355 = vmatpush2.msra.mxu0 0.0
    %356 = vmatprep.mubr.f32.mxu0 0.0
    %357 = vmatmul.mubr.f32.gmra.mxu0 %v287
    %v358 = vpop.f32.mrf.mxu0
    %v359 = vadd.f32 %v284, %v358
    %v360 = vpop.f32.mrf.mxu0
    %361 = vmatprep.mubr.f32.mxu0 0.0
    %362 = vmatmul.mubr.f32.gmra.mxu0 %v290
    %v363 = vpop.f32.mrf.mxu0
    %v364 = vadd.f32 %v284, %v363
    %v365 = vpop.f32.mrf.mxu0
    %366 = vdwg.mxu0
    %v367 = vld [vmem:[#allocation5] sm:$0xff]
    %v368 = vld [vmem:[#allocation5 + $0x8] sm:$0xff]
    %v370 = vsel %vm195, %v193, 0
    %v373 = vsel %vm195, %v194, 0
    %375 = vmatprep.subr.mxu0 0.0
    %376 = vmatpush1.msra.mxu0 0.0
    %377 = vmatprep.subr.mxu0 0.0
    %378 = vmatpush1.msra.mxu0 0.0
    %379 = vmatprep.subr.mxu0 0.0
    %380 = vmatpush1.msra.mxu0 0.0
    %381 = vmatprep.subr.mxu0 0.0
    %382 = vmatpush1.msra.mxu0 0.0
    %383 = vmatprep.subr.mxu0 0.0
    %384 = vmatpush1.msra.mxu0 0.0
    %385 = vmatprep.subr.mxu0 0.0
    %386 = vmatpush1.msra.mxu0 0.0
    %387 = vmatprep.subr.mxu0 0.0
    %388 = vmatpush1.msra.mxu0 0.0
    %389 = vmatprep.subr.mxu0 0.0
    %390 = vmatpush1.msra.mxu0 0.0
    %391 = vmatprep.subr.mxu0 0.0
    %392 = vmatpush1.msra.mxu0 0.0
    %393 = vmatprep.subr.mxu0 0.0
    %394 = vmatpush1.msra.mxu0 0.0
    %395 = vmatprep.subr.mxu0 0.0
    %396 = vmatpush1.msra.mxu0 0.0
    %397 = vmatprep.subr.mxu0 0.0
    %398 = vmatpush1.msra.mxu0 0.0
    %399 = vmatprep.subr.mxu0 0.0
    %400 = vmatpush1.msra.mxu0 0.0
    %401 = vmatprep.subr.mxu0 0.0
    %402 = vmatpush1.msra.mxu0 0.0
    %403 = vmatprep.subr.mxu0 0.0
    %404 = vmatpush1.msra.mxu0 %v368
    %405 = vmatprep.subr.mxu0 0.0
    %406 = vmatpush1.msra.mxu0 %v367
    %407 = vmatprep.subr.mxu0 0.0
    %408 = vmatpush2.msra.mxu0 0.0
    %409 = vmatprep.subr.mxu0 0.0
    %410 = vmatpush2.msra.mxu0 0.0
    %411 = vmatprep.subr.mxu0 0.0
    %412 = vmatpush2.msra.mxu0 0.0
    %413 = vmatprep.subr.mxu0 0.0
    %414 = vmatpush2.msra.mxu0 0.0
    %415 = vmatprep.subr.mxu0 0.0
    %416 = vmatpush2.msra.mxu0 0.0
    %417 = vmatprep.subr.mxu0 0.0
    %418 = vmatpush2.msra.mxu0 0.0
    %419 = vmatprep.subr.mxu0 0.0
    %420 = vmatpush2.msra.mxu0 0.0
    %421 = vmatprep.subr.mxu0 0.0
    %422 = vmatpush2.msra.mxu0 0.0
    %423 = vmatprep.subr.mxu0 0.0
    %424 = vmatpush2.msra.mxu0 0.0
    %425 = vmatprep.subr.mxu0 0.0
    %426 = vmatpush2.msra.mxu0 0.0
    %427 = vmatprep.subr.mxu0 0.0
    %428 = vmatpush2.msra.mxu0 0.0
    %429 = vmatprep.subr.mxu0 0.0
    %430 = vmatpush2.msra.mxu0 0.0
    %431 = vmatprep.subr.mxu0 0.0
    %432 = vmatpush2.msra.mxu0 0.0
    %433 = vmatprep.subr.mxu0 0.0
    %434 = vmatpush2.msra.mxu0 0.0
    %435 = vmatprep.subr.mxu0 0.0
    %436 = vmatpush2.msra.mxu0 0.0
    %437 = vmatprep.subr.mxu0 0.0
    %438 = vmatpush2.msra.mxu0 0.0
    %439 = vmatprep.mubr.f32.mxu0 0.0
    %440 = vmatmul.mubr.f32.gmra.mxu0 %v370
    %v441 = vpop.f32.mrf.mxu0
    %v442 = vadd.f32 0.0, %v441
    %v443 = vpop.f32.mrf.mxu0
    %444 = vmatprep.mubr.f32.mxu0 0.0
    %445 = vmatmul.mubr.f32.gmra.mxu0 %v373
    %v446 = vpop.f32.mrf.mxu0
    %v447 = vadd.f32 0.0, %v446
    %v448 = vpop.f32.mrf.mxu0
    %449 = vdwg.mxu0
    %v450 = vadd.f32 %v359, %v442
    %v451 = vadd.f32 %v364, %v447
    %v452 = vmax.f32 %v450, 0.0
    %v453 = vmax.f32 %v451, 0.0
    %v455 = vsel %vm195, %v192, 0
    %457 = vmatprep.subr.mxu0 0.0
    %458 = vmatpush1.msra.mxu0 0.0
    %459 = vmatprep.subr.mxu0 0.0
    %460 = vmatpush1.msra.mxu0 0.0
    %461 = vmatprep.subr.mxu0 0.0
    %462 = vmatpush1.msra.mxu0 0.0
    %463 = vmatprep.subr.mxu0 0.0
    %464 = vmatpush1.msra.mxu0 0.0
    %465 = vmatprep.subr.mxu0 0.0
    %466 = vmatpush1.msra.mxu0 0.0
    %467 = vmatprep.subr.mxu0 0.0
    %468 = vmatpush1.msra.mxu0 0.0
    %469 = vmatprep.subr.mxu0 0.0
    %470 = vmatpush1.msra.mxu0 0.0
    %471 = vmatprep.subr.mxu0 0.0
    %472 = vmatpush1.msra.mxu0 0.0
    %473 = vmatprep.subr.mxu0 0.0
    %474 = vmatpush1.msra.mxu0 0.0
    %475 = vmatprep.subr.mxu0 0.0
    %476 = vmatpush1.msra.mxu0 0.0
    %477 = vmatprep.subr.mxu0 0.0
    %478 = vmatpush1.msra.mxu0 0.0
    %479 = vmatprep.subr.mxu0 0.0
    %480 = vmatpush1.msra.mxu0 0.0
    %481 = vmatprep.subr.mxu0 0.0
    %482 = vmatpush1.msra.mxu0 0.0
    %483 = vmatprep.subr.mxu0 0.0
    %484 = vmatpush1.msra.mxu0 0.0
    %485 = vmatprep.subr.mxu0 0.0
    %486 = vmatpush1.msra.mxu0 %v453
    %487 = vmatprep.subr.mxu0 0.0
    %488 = vmatpush1.msra.mxu0 %v452
    %489 = vmatprep.subr.mxu0 0.0
    %490 = vmatpush2.msra.mxu0 0.0
    %491 = vmatprep.subr.mxu0 0.0
    %492 = vmatpush2.msra.mxu0 0.0
    %493 = vmatprep.subr.mxu0 0.0
    %494 = vmatpush2.msra.mxu0 0.0
    %495 = vmatprep.subr.mxu0 0.0
    %496 = vmatpush2.msra.mxu0 0.0
    %497 = vmatprep.subr.mxu0 0.0
    %498 = vmatpush2.msra.mxu0 0.0
    %499 = vmatprep.subr.mxu0 0.0
    %500 = vmatpush2.msra.mxu0 0.0
    %501 = vmatprep.subr.mxu0 0.0
    %502 = vmatpush2.msra.mxu0 0.0
    %503 = vmatprep.subr.mxu0 0.0
    %504 = vmatpush2.msra.mxu0 0.0
    %505 = vmatprep.subr.mxu0 0.0
    %506 = vmatpush2.msra.mxu0 0.0
    %507 = vmatprep.subr.mxu0 0.0
    %508 = vmatpush2.msra.mxu0 0.0
    %509 = vmatprep.subr.mxu0 0.0
    %510 = vmatpush2.msra.mxu0 0.0
    %511 = vmatprep.subr.mxu0 0.0
    %512 = vmatpush2.msra.mxu0 0.0
    %513 = vmatprep.subr.mxu0 0.0
    %514 = vmatpush2.msra.mxu0 0.0
    %515 = vmatprep.subr.mxu0 0.0
    %516 = vmatpush2.msra.mxu0 0.0
    %517 = vmatprep.subr.mxu0 0.0
    %518 = vmatpush2.msra.mxu0 0.0
    %519 = vmatprep.subr.mxu0 0.0
    %520 = vmatpush2.msra.mxu0 0.0
    %521 = vmatprep.mubr.f32.mxu0 0.0
    %522 = vmatmul.mubr.f32.gmra.mxu0 %v455
    %v523 = vpop.f32.mrf.mxu0
    %v524 = vadd.f32 0.0, %v523
    %v525 = vpop.f32.mrf.mxu0
    %526 = vdwg.mxu0
    %527 = vmatprep.subr.mxu0 0.0
    %528 = vmatpush1.msra.mxu0 0.0
    %529 = vmatprep.subr.mxu0 0.0
    %530 = vmatpush1.msra.mxu0 0.0
    %531 = vmatprep.subr.mxu0 0.0
    %532 = vmatpush1.msra.mxu0 0.0
    %533 = vmatprep.subr.mxu0 0.0
    %534 = vmatpush1.msra.mxu0 0.0
    %535 = vmatprep.subr.mxu0 0.0
    %536 = vmatpush1.msra.mxu0 0.0
    %537 = vmatprep.subr.mxu0 0.0
    %538 = vmatpush1.msra.mxu0 0.0
    %539 = vmatprep.subr.mxu0 0.0
    %540 = vmatpush1.msra.mxu0 0.0
    %541 = vmatprep.subr.mxu0 0.0
    %542 = vmatpush1.msra.mxu0 0.0
    %543 = vmatprep.subr.mxu0 0.0
    %544 = vmatpush1.msra.mxu0 0.0
    %545 = vmatprep.subr.mxu0 0.0
    %546 = vmatpush1.msra.mxu0 0.0
    %547 = vmatprep.subr.mxu0 0.0
    %548 = vmatpush1.msra.mxu0 0.0
    %549 = vmatprep.subr.mxu0 0.0
    %550 = vmatpush1.msra.mxu0 0.0
    %551 = vmatprep.subr.mxu0 0.0
    %552 = vmatpush1.msra.mxu0 0.0
    %553 = vmatprep.subr.mxu0 0.0
    %554 = vmatpush1.msra.mxu0 0.0
    %555 = vmatprep.subr.mxu0 0.0
    %556 = vmatpush1.msra.mxu0 %v453
    %557 = vmatprep.subr.mxu0 0.0
    %558 = vmatpush1.msra.mxu0 %v452
    %559 = vmatprep.subr.mxu0 0.0
    %560 = vmatpush2.msra.mxu0 0.0
    %561 = vmatprep.subr.mxu0 0.0
    %562 = vmatpush2.msra.mxu0 0.0
    %563 = vmatprep.subr.mxu0 0.0
    %564 = vmatpush2.msra.mxu0 0.0
    %565 = vmatprep.subr.mxu0 0.0
    %566 = vmatpush2.msra.mxu0 0.0
    %567 = vmatprep.subr.mxu0 0.0
    %568 = vmatpush2.msra.mxu0 0.0
    %569 = vmatprep.subr.mxu0 0.0
    %570 = vmatpush2.msra.mxu0 0.0
    %571 = vmatprep.subr.mxu0 0.0
    %572 = vmatpush2.msra.mxu0 0.0
    %573 = vmatprep.subr.mxu0 0.0
    %574 = vmatpush2.msra.mxu0 0.0
    %575 = vmatprep.subr.mxu0 0.0
    %576 = vmatpush2.msra.mxu0 0.0
    %577 = vmatprep.subr.mxu0 0.0
    %578 = vmatpush2.msra.mxu0 0.0
    %579 = vmatprep.subr.mxu0 0.0
    %580 = vmatpush2.msra.mxu0 0.0
    %581 = vmatprep.subr.mxu0 0.0
    %582 = vmatpush2.msra.mxu0 0.0
    %583 = vmatprep.subr.mxu0 0.0
    %584 = vmatpush2.msra.mxu0 0.0
    %585 = vmatprep.subr.mxu0 0.0
    %586 = vmatpush2.msra.mxu0 0.0
    %587 = vmatprep.subr.mxu0 0.0
    %588 = vmatpush2.msra.mxu0 0.0
    %589 = vmatprep.subr.mxu0 0.0
    %590 = vmatpush2.msra.mxu0 0.0
    %591 = vmatprep.mubr.f32.mxu0 0.0
    %592 = vmatmul.mubr.f32.gmra.mxu0 %v197
    %v593 = vpop.f32.mrf.mxu0
    %v594 = vadd.f32 0.0, %v593
    %v595 = vpop.f32.mrf.mxu0
    %596 = vmatprep.mubr.f32.mxu0 0.0
    %597 = vmatmul.mubr.f32.gmra.mxu0 %v200
    %v598 = vpop.f32.mrf.mxu0
    %v599 = vadd.f32 0.0, %v598
    %v600 = vpop.f32.mrf.mxu0
    %601 = vdwg.mxu0
    %v602 = vld [vmem:[%s9] sm:$0xff]
    %v603 = vld [vmem:[%s9 + $0x8] sm:$0xff]
    %v604 = vld [vmem:[%s9 + $0x10] sm:$0xff]
    %v605 = vld [vmem:[%s9 + $0x18] sm:$0xff]
    %v606 = vld [vmem:[%s10] sm:$0x1]
    %v608 = vlaneseq
    %v609 = vshrl.u32 %v608, 7
    %v610 = vsub.s32 0, %v609
    %v611 = vrot.slane %v606, %v610
    %vm613 = vcmask 261120
    %v615 = vsel %vm613, %v594, 0
    %v618 = vsel %vm613, %v599, 0
    %620 = vmatprep.subr.mxu0 0.0
    %621 = vmatpush1.msra.mxu0 0.0
    %622 = vmatprep.subr.mxu0 0.0
    %623 = vmatpush1.msra.mxu0 0.0
    %624 = vmatprep.subr.mxu0 0.0
    %625 = vmatpush1.msra.mxu0 0.0
    %626 = vmatprep.subr.mxu0 0.0
    %627 = vmatpush1.msra.mxu0 0.0
    %628 = vmatprep.subr.mxu0 0.0
    %629 = vmatpush1.msra.mxu0 0.0
    %630 = vmatprep.subr.mxu0 0.0
    %631 = vmatpush1.msra.mxu0 0.0
    %632 = vmatprep.subr.mxu0 0.0
    %633 = vmatpush1.msra.mxu0 0.0
    %634 = vmatprep.subr.mxu0 0.0
    %635 = vmatpush1.msra.mxu0 0.0
    %636 = vmatprep.subr.mxu0 0.0
    %637 = vmatpush1.msra.mxu0 0.0
    %638 = vmatprep.subr.mxu0 0.0
    %639 = vmatpush1.msra.mxu0 0.0
    %640 = vmatprep.subr.mxu0 0.0
    %641 = vmatpush1.msra.mxu0 0.0
    %642 = vmatprep.subr.mxu0 0.0
    %643 = vmatpush1.msra.mxu0 0.0
    %644 = vmatprep.subr.mxu0 0.0
    %645 = vmatpush1.msra.mxu0 %v605
    %646 = vmatprep.subr.mxu0 0.0
    %647 = vmatpush1.msra.mxu0 %v604
    %648 = vmatprep.subr.mxu0 0.0
    %649 = vmatpush1.msra.mxu0 %v603
    %650 = vmatprep.subr.mxu0 0.0
    %651 = vmatpush1.msra.mxu0 %v602
    %652 = vmatprep.subr.mxu0 0.0
    %653 = vmatpush2.msra.mxu0 0.0
    %654 = vmatprep.subr.mxu0 0.0
    %655 = vmatpush2.msra.mxu0 0.0
    %656 = vmatprep.subr.mxu0 0.0
    %657 = vmatpush2.msra.mxu0 0.0
    %658 = vmatprep.subr.mxu0 0.0
    %659 = vmatpush2.msra.mxu0 0.0
    %660 = vmatprep.subr.mxu0 0.0
    %661 = vmatpush2.msra.mxu0 0.0
    %662 = vmatprep.subr.mxu0 0.0
    %663 = vmatpush2.msra.mxu0 0.0
    %664 = vmatprep.subr.mxu0 0.0
    %665 = vmatpush2.msra.mxu0 0.0
    %666 = vmatprep.subr.mxu0 0.0
    %667 = vmatpush2.msra.mxu0 0.0
    %668 = vmatprep.subr.mxu0 0.0
    %669 = vmatpush2.msra.mxu0 0.0
    %670 = vmatprep.subr.mxu0 0.0
    %671 = vmatpush2.msra.mxu0 0.0
    %672 = vmatprep.subr.mxu0 0.0
    %673 = vmatpush2.msra.mxu0 0.0
    %674 = vmatprep.subr.mxu0 0.0
    %675 = vmatpush2.msra.mxu0 0.0
    %676 = vmatprep.subr.mxu0 0.0
    %677 = vmatpush2.msra.mxu0 0.0
    %678 = vmatprep.subr.mxu0 0.0
    %679 = vmatpush2.msra.mxu0 0.0
    %680 = vmatprep.subr.mxu0 0.0
    %681 = vmatpush2.msra.mxu0 0.0
    %682 = vmatprep.subr.mxu0 0.0
    %683 = vmatpush2.msra.mxu0 0.0
    %684 = vmatprep.mubr.f32.mxu0 0.0
    %685 = vmatmul.mubr.f32.gmra.mxu0 %v615
    %v686 = vpop.f32.mrf.mxu0
    %v687 = vadd.f32 %v611, %v686
    %v688 = vpop.f32.mrf.mxu0
    %689 = vmatprep.mubr.f32.mxu0 0.0
    %690 = vmatmul.mubr.f32.gmra.mxu0 %v618
    %v691 = vpop.f32.mrf.mxu0
    %v692 = vadd.f32 %v611, %v691
    %v693 = vpop.f32.mrf.mxu0
    %694 = vdwg.mxu0
    %v695 = vld [vmem:[%s11] sm:$0xff]
    %v696 = vld [vmem:[%s11 + $0x8] sm:$0xff]
    %v697 = vld [vmem:[%s11 + $0x10] sm:$0xff]
    %v698 = vld [vmem:[%s11 + $0x18] sm:$0xff]
    %v700 = vsel %vm613, %v452, 0
    %v703 = vsel %vm613, %v453, 0
    %705 = vmatprep.subr.mxu0 0.0
    %706 = vmatpush1.msra.mxu0 0.0
    %707 = vmatprep.subr.mxu0 0.0
    %708 = vmatpush1.msra.mxu0 0.0
    %709 = vmatprep.subr.mxu0 0.0
    %710 = vmatpush1.msra.mxu0 0.0
    %711 = vmatprep.subr.mxu0 0.0
    %712 = vmatpush1.msra.mxu0 0.0
    %713 = vmatprep.subr.mxu0 0.0
    %714 = vmatpush1.msra.mxu0 0.0
    %715 = vmatprep.subr.mxu0 0.0
    %716 = vmatpush1.msra.mxu0 0.0
    %717 = vmatprep.subr.mxu0 0.0
    %718 = vmatpush1.msra.mxu0 0.0
    %719 = vmatprep.subr.mxu0 0.0
    %720 = vmatpush1.msra.mxu0 0.0
    %721 = vmatprep.subr.mxu0 0.0
    %722 = vmatpush1.msra.mxu0 0.0
    %723 = vmatprep.subr.mxu0 0.0
    %724 = vmatpush1.msra.mxu0 0.0
    %725 = vmatprep.subr.mxu0 0.0
    %726 = vmatpush1.msra.mxu0 0.0
    %727 = vmatprep.subr.mxu0 0.0
    %728 = vmatpush1.msra.mxu0 0.0
    %729 = vmatprep.subr.mxu0 0.0
    %730 = vmatpush1.msra.mxu0 %v698
    %731 = vmatprep.subr.mxu0 0.0
    %732 = vmatpush1.msra.mxu0 %v697
    %733 = vmatprep.subr.mxu0 0.0
    %734 = vmatpush1.msra.mxu0 %v696
    %735 = vmatprep.subr.mxu0 0.0
    %736 = vmatpush1.msra.mxu0 %v695
    %737 = vmatprep.subr.mxu0 0.0
    %738 = vmatpush2.msra.mxu0 0.0
    %739 = vmatprep.subr.mxu0 0.0
    %740 = vmatpush2.msra.mxu0 0.0
    %741 = vmatprep.subr.mxu0 0.0
    %742 = vmatpush2.msra.mxu0 0.0
    %743 = vmatprep.subr.mxu0 0.0
    %744 = vmatpush2.msra.mxu0 0.0
    %745 = vmatprep.subr.mxu0 0.0
    %746 = vmatpush2.msra.mxu0 0.0
    %747 = vmatprep.subr.mxu0 0.0
    %748 = vmatpush2.msra.mxu0 0.0
    %749 = vmatprep.subr.mxu0 0.0
    %750 = vmatpush2.msra.mxu0 0.0
    %751 = vmatprep.subr.mxu0 0.0
    %752 = vmatpush2.msra.mxu0 0.0
    %753 = vmatprep.subr.mxu0 0.0
    %754 = vmatpush2.msra.mxu0 0.0
    %755 = vmatprep.subr.mxu0 0.0
    %756 = vmatpush2.msra.mxu0 0.0
    %757 = vmatprep.subr.mxu0 0.0
    %758 = vmatpush2.msra.mxu0 0.0
    %759 = vmatprep.subr.mxu0 0.0
    %760 = vmatpush2.msra.mxu0 0.0
    %761 = vmatprep.subr.mxu0 0.0
    %762 = vmatpush2.msra.mxu0 0.0
    %763 = vmatprep.subr.mxu0 0.0
    %764 = vmatpush2.msra.mxu0 0.0
    %765 = vmatprep.subr.mxu0 0.0
    %766 = vmatpush2.msra.mxu0 0.0
    %767 = vmatprep.subr.mxu0 0.0
    %768 = vmatpush2.msra.mxu0 0.0
    %769 = vmatprep.mubr.f32.mxu0 0.0
    %770 = vmatmul.mubr.f32.gmra.mxu0 %v700
    %v771 = vpop.f32.mrf.mxu0
    %v772 = vadd.f32 0.0, %v771
    %v773 = vpop.f32.mrf.mxu0
    %774 = vmatprep.mubr.f32.mxu0 0.0
    %775 = vmatmul.mubr.f32.gmra.mxu0 %v703
    %v776 = vpop.f32.mrf.mxu0
    %v777 = vadd.f32 0.0, %v776
    %v778 = vpop.f32.mrf.mxu0
    %779 = vdwg.mxu0
    %v780 = vadd.f32 %v687, %v772
    %v781 = vadd.f32 %v692, %v777
    %v782 = vmax.f32 %v780, 0.0
    %v783 = vmax.f32 %v781, 0.0
    %784 = vmatprep.subr.mxu0 0.0
    %785 = vmatpush1.msra.mxu0 0.0
    %786 = vmatprep.subr.mxu0 0.0
    %787 = vmatpush1.msra.mxu0 0.0
    %788 = vmatprep.subr.mxu0 0.0
    %789 = vmatpush1.msra.mxu0 0.0
    %790 = vmatprep.subr.mxu0 0.0
    %791 = vmatpush1.msra.mxu0 0.0
    %792 = vmatprep.subr.mxu0 0.0
    %793 = vmatpush1.msra.mxu0 0.0
    %794 = vmatprep.subr.mxu0 0.0
    %795 = vmatpush1.msra.mxu0 0.0
    %796 = vmatprep.subr.mxu0 0.0
    %797 = vmatpush1.msra.mxu0 0.0
    %798 = vmatprep.subr.mxu0 0.0
    %799 = vmatpush1.msra.mxu0 0.0
    %800 = vmatprep.subr.mxu0 0.0
    %801 = vmatpush1.msra.mxu0 0.0
    %802 = vmatprep.subr.mxu0 0.0
    %803 = vmatpush1.msra.mxu0 0.0
    %804 = vmatprep.subr.mxu0 0.0
    %805 = vmatpush1.msra.mxu0 0.0
    %806 = vmatprep.subr.mxu0 0.0
    %807 = vmatpush1.msra.mxu0 0.0
    %808 = vmatprep.subr.mxu0 0.0
    %809 = vmatpush1.msra.mxu0 0.0
    %810 = vmatprep.subr.mxu0 0.0
    %811 = vmatpush1.msra.mxu0 0.0
    %812 = vmatprep.subr.mxu0 0.0
    %813 = vmatpush1.msra.mxu0 %v783
    %814 = vmatprep.subr.mxu0 0.0
    %815 = vmatpush1.msra.mxu0 %v782
    %816 = vmatprep.subr.mxu0 0.0
    %817 = vmatpush2.msra.mxu0 0.0
    %818 = vmatprep.subr.mxu0 0.0
    %819 = vmatpush2.msra.mxu0 0.0
    %820 = vmatprep.subr.mxu0 0.0
    %821 = vmatpush2.msra.mxu0 0.0
    %822 = vmatprep.subr.mxu0 0.0
    %823 = vmatpush2.msra.mxu0 0.0
    %824 = vmatprep.subr.mxu0 0.0
    %825 = vmatpush2.msra.mxu0 0.0
    %826 = vmatprep.subr.mxu0 0.0
    %827 = vmatpush2.msra.mxu0 0.0
    %828 = vmatprep.subr.mxu0 0.0
    %829 = vmatpush2.msra.mxu0 0.0
    %830 = vmatprep.subr.mxu0 0.0
    %831 = vmatpush2.msra.mxu0 0.0
    %832 = vmatprep.subr.mxu0 0.0
    %833 = vmatpush2.msra.mxu0 0.0
    %834 = vmatprep.subr.mxu0 0.0
    %835 = vmatpush2.msra.mxu0 0.0
    %836 = vmatprep.subr.mxu0 0.0
    %837 = vmatpush2.msra.mxu0 0.0
    %838 = vmatprep.subr.mxu0 0.0
    %839 = vmatpush2.msra.mxu0 0.0
    %840 = vmatprep.subr.mxu0 0.0
    %841 = vmatpush2.msra.mxu0 0.0
    %842 = vmatprep.subr.mxu0 0.0
    %843 = vmatpush2.msra.mxu0 0.0
    %844 = vmatprep.subr.mxu0 0.0
    %845 = vmatpush2.msra.mxu0 0.0
    %846 = vmatprep.subr.mxu0 0.0
    %847 = vmatpush2.msra.mxu0 0.0
    %848 = vmatprep.mubr.f32.mxu0 0.0
    %849 = vmatmul.mubr.f32.gmra.mxu0 %v455
    %v850 = vpop.f32.mrf.mxu0
    %v851 = vadd.f32 0.0, %v850
    %v852 = vpop.f32.mrf.mxu0
    %853 = vdwg.mxu0
    %v854 = vld [vmem:[%s3] sm:$0xff]
    %v855 = vld [vmem:[%s3 + $0x8] sm:$0xff]
    %v856 = vld [vmem:[%s5] sm:$0x3]
    %v857 = vld [vmem:[%s2] sm:$0xff]
    %v858 = vld [vmem:[%s2 + $0x8] sm:$0xff]
    %v860 = vsel %vm195, %v854, 0
    %v863 = vsel %vm195, %v855, 0
    %865 = vmatprep.subr.mxu0 0.0
    %866 = vmatpush1.msra.mxu0 0.0
    %867 = vmatprep.subr.mxu0 0.0
    %868 = vmatpush1.msra.mxu0 0.0
    %869 = vmatprep.subr.mxu0 0.0
    %870 = vmatpush1.msra.mxu0 0.0
    %871 = vmatprep.subr.mxu0 0.0
    %872 = vmatpush1.msra.mxu0 0.0
    %873 = vmatprep.subr.mxu0 0.0
    %874 = vmatpush1.msra.mxu0 0.0
    %875 = vmatprep.subr.mxu0 0.0
    %876 = vmatpush1.msra.mxu0 0.0
    %877 = vmatprep.subr.mxu0 0.0
    %878 = vmatpush1.msra.mxu0 0.0
    %879 = vmatprep.subr.mxu0 0.0
    %880 = vmatpush1.msra.mxu0 0.0
    %881 = vmatprep.subr.mxu0 0.0
    %882 = vmatpush1.msra.mxu0 0.0
    %883 = vmatprep.subr.mxu0 0.0
    %884 = vmatpush1.msra.mxu0 0.0
    %885 = vmatprep.subr.mxu0 0.0
    %886 = vmatpush1.msra.mxu0 0.0
    %887 = vmatprep.subr.mxu0 0.0
    %888 = vmatpush1.msra.mxu0 0.0
    %889 = vmatprep.subr.mxu0 0.0
    %890 = vmatpush1.msra.mxu0 0.0
    %891 = vmatprep.subr.mxu0 0.0
    %892 = vmatpush1.msra.mxu0 0.0
    %893 = vmatprep.subr.mxu0 0.0
    %894 = vmatpush1.msra.mxu0 %v858
    %895 = vmatprep.subr.mxu0 0.0
    %896 = vmatpush1.msra.mxu0 %v857
    %897 = vmatprep.subr.mxu0 0.0
    %898 = vmatpush2.msra.mxu0 0.0
    %899 = vmatprep.subr.mxu0 0.0
    %900 = vmatpush2.msra.mxu0 0.0
    %901 = vmatprep.subr.mxu0 0.0
    %902 = vmatpush2.msra.mxu0 0.0
    %903 = vmatprep.subr.mxu0 0.0
    %904 = vmatpush2.msra.mxu0 0.0
    %905 = vmatprep.subr.mxu0 0.0
    %906 = vmatpush2.msra.mxu0 0.0
    %907 = vmatprep.subr.mxu0 0.0
    %908 = vmatpush2.msra.mxu0 0.0
    %909 = vmatprep.subr.mxu0 0.0
    %910 = vmatpush2.msra.mxu0 0.0
    %911 = vmatprep.subr.mxu0 0.0
    %912 = vmatpush2.msra.mxu0 0.0
    %913 = vmatprep.subr.mxu0 0.0
    %914 = vmatpush2.msra.mxu0 0.0
    %915 = vmatprep.subr.mxu0 0.0
    %916 = vmatpush2.msra.mxu0 0.0
    %917 = vmatprep.subr.mxu0 0.0
    %918 = vmatpush2.msra.mxu0 0.0
    %919 = vmatprep.subr.mxu0 0.0
    %920 = vmatpush2.msra.mxu0 0.0
    %921 = vmatprep.subr.mxu0 0.0
    %922 = vmatpush2.msra.mxu0 0.0
    %923 = vmatprep.subr.mxu0 0.0
    %924 = vmatpush2.msra.mxu0 0.0
    %925 = vmatprep.subr.mxu0 0.0
    %926 = vmatpush2.msra.mxu0 0.0
    %927 = vmatprep.subr.mxu0 0.0
    %928 = vmatpush2.msra.mxu0 0.0
    %929 = vmatprep.mubr.f32.mxu0 0.0
    %930 = vmatmul.mubr.f32.gmra.mxu0 %v860
    %v931 = vpop.f32.mrf.mxu0
    %v932 = vadd.f32 0.0, %v931
    %v933 = vpop.f32.mrf.mxu0
    %934 = vmatprep.mubr.f32.mxu0 0.0
    %935 = vmatmul.mubr.f32.gmra.mxu0 %v863
    %v936 = vpop.f32.mrf.mxu0
    %v937 = vadd.f32 0.0, %v936
    %v938 = vpop.f32.mrf.mxu0
    %939 = vdwg.mxu0
    %v940 = vld [vmem:[#allocation7] sm:$0xff]
    %v941 = vld [vmem:[#allocation7 + $0x8] sm:$0xff]
    %v942 = vld [vmem:[#allocation8] sm:$0x1]
    %v944 = vlaneseq
    %v945 = vshrl.u32 %v944, 7
    %v946 = vsub.s32 0, %v945
    %v947 = vrot.slane %v942, %v946
    %v950 = vsel %vm195, %v932, 0
    %v953 = vsel %vm195, %v937, 0
    %955 = vmatprep.subr.mxu0 0.0
    %956 = vmatpush1.msra.mxu0 0.0
    %957 = vmatprep.subr.mxu0 0.0
    %958 = vmatpush1.msra.mxu0 0.0
    %959 = vmatprep.subr.mxu0 0.0
    %960 = vmatpush1.msra.mxu0 0.0
    %961 = vmatprep.subr.mxu0 0.0
    %962 = vmatpush1.msra.mxu0 0.0
    %963 = vmatprep.subr.mxu0 0.0
    %964 = vmatpush1.msra.mxu0 0.0
    %965 = vmatprep.subr.mxu0 0.0
    %966 = vmatpush1.msra.mxu0 0.0
    %967 = vmatprep.subr.mxu0 0.0
    %968 = vmatpush1.msra.mxu0 0.0
    %969 = vmatprep.subr.mxu0 0.0
    %970 = vmatpush1.msra.mxu0 0.0
    %971 = vmatprep.subr.mxu0 0.0
    %972 = vmatpush1.msra.mxu0 0.0
    %973 = vmatprep.subr.mxu0 0.0
    %974 = vmatpush1.msra.mxu0 0.0
    %975 = vmatprep.subr.mxu0 0.0
    %976 = vmatpush1.msra.mxu0 0.0
    %977 = vmatprep.subr.mxu0 0.0
    %978 = vmatpush1.msra.mxu0 0.0
    %979 = vmatprep.subr.mxu0 0.0
    %980 = vmatpush1.msra.mxu0 0.0
    %981 = vmatprep.subr.mxu0 0.0
    %982 = vmatpush1.msra.mxu0 0.0
    %983 = vmatprep.subr.mxu0 0.0
    %984 = vmatpush1.msra.mxu0 %v941
    %985 = vmatprep.subr.mxu0 0.0
    %986 = vmatpush1.msra.mxu0 %v940
    %987 = vmatprep.subr.mxu0 0.0
    %988 = vmatpush2.msra.mxu0 0.0
    %989 = vmatprep.subr.mxu0 0.0
    %990 = vmatpush2.msra.mxu0 0.0
    %991 = vmatprep.subr.mxu0 0.0
    %992 = vmatpush2.msra.mxu0 0.0
    %993 = vmatprep.subr.mxu0 0.0
    %994 = vmatpush2.msra.mxu0 0.0
    %995 = vmatprep.subr.mxu0 0.0
    %996 = vmatpush2.msra.mxu0 0.0
    %997 = vmatprep.subr.mxu0 0.0
    %998 = vmatpush2.msra.mxu0 0.0
    %999 = vmatprep.subr.mxu0 0.0
    %1000 = vmatpush2.msra.mxu0 0.0
    %1001 = vmatprep.subr.mxu0 0.0
    %1002 = vmatpush2.msra.mxu0 0.0
    %1003 = vmatprep.subr.mxu0 0.0
    %1004 = vmatpush2.msra.mxu0 0.0
    %1005 = vmatprep.subr.mxu0 0.0
    %1006 = vmatpush2.msra.mxu0 0.0
    %1007 = vmatprep.subr.mxu0 0.0
    %1008 = vmatpush2.msra.mxu0 0.0
    %1009 = vmatprep.subr.mxu0 0.0
    %1010 = vmatpush2.msra.mxu0 0.0
    %1011 = vmatprep.subr.mxu0 0.0
    %1012 = vmatpush2.msra.mxu0 0.0
    %1013 = vmatprep.subr.mxu0 0.0
    %1014 = vmatpush2.msra.mxu0 0.0
    %1015 = vmatprep.subr.mxu0 0.0
    %1016 = vmatpush2.msra.mxu0 0.0
    %1017 = vmatprep.subr.mxu0 0.0
    %1018 = vmatpush2.msra.mxu0 0.0
    %1019 = vmatprep.mubr.f32.mxu0 0.0
    %1020 = vmatmul.mubr.f32.gmra.mxu0 %v950
    %v1021 = vpop.f32.mrf.mxu0
    %v1022 = vadd.f32 %v947, %v1021
    %v1023 = vpop.f32.mrf.mxu0
    %1024 = vmatprep.mubr.f32.mxu0 0.0
    %1025 = vmatmul.mubr.f32.gmra.mxu0 %v953
    %v1026 = vpop.f32.mrf.mxu0
    %v1027 = vadd.f32 %v947, %v1026
    %v1028 = vpop.f32.mrf.mxu0
    %1029 = vdwg.mxu0
    %v1030 = vld [vmem:[#allocation10] sm:$0xff]
    %v1031 = vld [vmem:[#allocation10 + $0x8] sm:$0xff]
    %v1033 = vsel %vm195, %v857, 0
    %v1036 = vsel %vm195, %v858, 0
    %1038 = vmatprep.subr.mxu0 0.0
    %1039 = vmatpush1.msra.mxu0 0.0
    %1040 = vmatprep.subr.mxu0 0.0
    %1041 = vmatpush1.msra.mxu0 0.0
    %1042 = vmatprep.subr.mxu0 0.0
    %1043 = vmatpush1.msra.mxu0 0.0
    %1044 = vmatprep.subr.mxu0 0.0
    %1045 = vmatpush1.msra.mxu0 0.0
    %1046 = vmatprep.subr.mxu0 0.0
    %1047 = vmatpush1.msra.mxu0 0.0
    %1048 = vmatprep.subr.mxu0 0.0
    %1049 = vmatpush1.msra.mxu0 0.0
    %1050 = vmatprep.subr.mxu0 0.0
    %1051 = vmatpush1.msra.mxu0 0.0
    %1052 = vmatprep.subr.mxu0 0.0
    %1053 = vmatpush1.msra.mxu0 0.0
    %1054 = vmatprep.subr.mxu0 0.0
    %1055 = vmatpush1.msra.mxu0 0.0
    %1056 = vmatprep.subr.mxu0 0.0
    %1057 = vmatpush1.msra.mxu0 0.0
    %1058 = vmatprep.subr.mxu0 0.0
    %1059 = vmatpush1.msra.mxu0 0.0
    %1060 = vmatprep.subr.mxu0 0.0
    %1061 = vmatpush1.msra.mxu0 0.0
    %1062 = vmatprep.subr.mxu0 0.0
    %1063 = vmatpush1.msra.mxu0 0.0
    %1064 = vmatprep.subr.mxu0 0.0
    %1065 = vmatpush1.msra.mxu0 0.0
    %1066 = vmatprep.subr.mxu0 0.0
    %1067 = vmatpush1.msra.mxu0 %v1031
    %1068 = vmatprep.subr.mxu0 0.0
    %1069 = vmatpush1.msra.mxu0 %v1030
    %1070 = vmatprep.subr.mxu0 0.0
    %1071 = vmatpush2.msra.mxu0 0.0
    %1072 = vmatprep.subr.mxu0 0.0
    %1073 = vmatpush2.msra.mxu0 0.0
    %1074 = vmatprep.subr.mxu0 0.0
    %1075 = vmatpush2.msra.mxu0 0.0
    %1076 = vmatprep.subr.mxu0 0.0
    %1077 = vmatpush2.msra.mxu0 0.0
    %1078 = vmatprep.subr.mxu0 0.0
    %1079 = vmatpush2.msra.mxu0 0.0
    %1080 = vmatprep.subr.mxu0 0.0
    %1081 = vmatpush2.msra.mxu0 0.0
    %1082 = vmatprep.subr.mxu0 0.0
    %1083 = vmatpush2.msra.mxu0 0.0
    %1084 = vmatprep.subr.mxu0 0.0
    %1085 = vmatpush2.msra.mxu0 0.0
    %1086 = vmatprep.subr.mxu0 0.0
    %1087 = vmatpush2.msra.mxu0 0.0
    %1088 = vmatprep.subr.mxu0 0.0
    %1089 = vmatpush2.msra.mxu0 0.0
    %1090 = vmatprep.subr.mxu0 0.0
    %1091 = vmatpush2.msra.mxu0 0.0
    %1092 = vmatprep.subr.mxu0 0.0
    %1093 = vmatpush2.msra.mxu0 0.0
    %1094 = vmatprep.subr.mxu0 0.0
    %1095 = vmatpush2.msra.mxu0 0.0
    %1096 = vmatprep.subr.mxu0 0.0
    %1097 = vmatpush2.msra.mxu0 0.0
    %1098 = vmatprep.subr.mxu0 0.0
    %1099 = vmatpush2.msra.mxu0 0.0
    %1100 = vmatprep.subr.mxu0 0.0
    %1101 = vmatpush2.msra.mxu0 0.0
    %1102 = vmatprep.mubr.f32.mxu0 0.0
    %1103 = vmatmul.mubr.f32.gmra.mxu0 %v1033
    %v1104 = vpop.f32.mrf.mxu0
    %v1105 = vadd.f32 0.0, %v1104
    %v1106 = vpop.f32.mrf.mxu0
    %1107 = vmatprep.mubr.f32.mxu0 0.0
    %1108 = vmatmul.mubr.f32.gmra.mxu0 %v1036
    %v1109 = vpop.f32.mrf.mxu0
    %v1110 = vadd.f32 0.0, %v1109
    %v1111 = vpop.f32.mrf.mxu0
    %1112 = vdwg.mxu0
    %v1113 = vadd.f32 %v1022, %v1105
    %v1114 = vadd.f32 %v1027, %v1110
    %v1115 = vmax.f32 %v1113, 0.0
    %v1116 = vmax.f32 %v1114, 0.0
    %v1118 = vsel %vm195, %v856, 0
    %1120 = vmatprep.subr.mxu0 0.0
    %1121 = vmatpush1.msra.mxu0 0.0
    %1122 = vmatprep.subr.mxu0 0.0
    %1123 = vmatpush1.msra.mxu0 0.0
    %1124 = vmatprep.subr.mxu0 0.0
    %1125 = vmatpush1.msra.mxu0 0.0
    %1126 = vmatprep.subr.mxu0 0.0
    %1127 = vmatpush1.msra.mxu0 0.0
    %1128 = vmatprep.subr.mxu0 0.0
    %1129 = vmatpush1.msra.mxu0 0.0
    %1130 = vmatprep.subr.mxu0 0.0
    %1131 = vmatpush1.msra.mxu0 0.0
    %1132 = vmatprep.subr.mxu0 0.0
    %1133 = vmatpush1.msra.mxu0 0.0
    %1134 = vmatprep.subr.mxu0 0.0
    %1135 = vmatpush1.msra.mxu0 0.0
    %1136 = vmatprep.subr.mxu0 0.0
    %1137 = vmatpush1.msra.mxu0 0.0
    %1138 = vmatprep.subr.mxu0 0.0
    %1139 = vmatpush1.msra.mxu0 0.0
    %1140 = vmatprep.subr.mxu0 0.0
    %1141 = vmatpush1.msra.mxu0 0.0
    %1142 = vmatprep.subr.mxu0 0.0
    %1143 = vmatpush1.msra.mxu0 0.0
    %1144 = vmatprep.subr.mxu0 0.0
    %1145 = vmatpush1.msra.mxu0 0.0
    %1146 = vmatprep.subr.mxu0 0.0
    %1147 = vmatpush1.msra.mxu0 0.0
    %1148 = vmatprep.subr.mxu0 0.0
    %1149 = vmatpush1.msra.mxu0 %v1116
    %1150 = vmatprep.subr.mxu0 0.0
    %1151 = vmatpush1.msra.mxu0 %v1115
    %1152 = vmatprep.subr.mxu0 0.0
    %1153 = vmatpush2.msra.mxu0 0.0
    %1154 = vmatprep.subr.mxu0 0.0
    %1155 = vmatpush2.msra.mxu0 0.0
    %1156 = vmatprep.subr.mxu0 0.0
    %1157 = vmatpush2.msra.mxu0 0.0
    %1158 = vmatprep.subr.mxu0 0.0
    %1159 = vmatpush2.msra.mxu0 0.0
    %1160 = vmatprep.subr.mxu0 0.0
    %1161 = vmatpush2.msra.mxu0 0.0
    %1162 = vmatprep.subr.mxu0 0.0
    %1163 = vmatpush2.msra.mxu0 0.0
    %1164 = vmatprep.subr.mxu0 0.0
    %1165 = vmatpush2.msra.mxu0 0.0
    %1166 = vmatprep.subr.mxu0 0.0
    %1167 = vmatpush2.msra.mxu0 0.0
    %1168 = vmatprep.subr.mxu0 0.0
    %1169 = vmatpush2.msra.mxu0 0.0
    %1170 = vmatprep.subr.mxu0 0.0
    %1171 = vmatpush2.msra.mxu0 0.0
    %1172 = vmatprep.subr.mxu0 0.0
    %1173 = vmatpush2.msra.mxu0 0.0
    %1174 = vmatprep.subr.mxu0 0.0
    %1175 = vmatpush2.msra.mxu0 0.0
    %1176 = vmatprep.subr.mxu0 0.0
    %1177 = vmatpush2.msra.mxu0 0.0
    %1178 = vmatprep.subr.mxu0 0.0
    %1179 = vmatpush2.msra.mxu0 0.0
    %1180 = vmatprep.subr.mxu0 0.0
    %1181 = vmatpush2.msra.mxu0 0.0
    %1182 = vmatprep.subr.mxu0 0.0
    %1183 = vmatpush2.msra.mxu0 0.0
    %1184 = vmatprep.mubr.f32.mxu0 0.0
    %1185 = vmatmul.mubr.f32.gmra.mxu0 %v1118
    %v1186 = vpop.f32.mrf.mxu0
    %v1187 = vadd.f32 0.0, %v1186
    %v1188 = vpop.f32.mrf.mxu0
    %1189 = vdwg.mxu0
    %1190 = vmatprep.subr.mxu0 0.0
    %1191 = vmatpush1.msra.mxu0 0.0
    %1192 = vmatprep.subr.mxu0 0.0
    %1193 = vmatpush1.msra.mxu0 0.0
    %1194 = vmatprep.subr.mxu0 0.0
    %1195 = vmatpush1.msra.mxu0 0.0
    %1196 = vmatprep.subr.mxu0 0.0
    %1197 = vmatpush1.msra.mxu0 0.0
    %1198 = vmatprep.subr.mxu0 0.0
    %1199 = vmatpush1.msra.mxu0 0.0
    %1200 = vmatprep.subr.mxu0 0.0
    %1201 = vmatpush1.msra.mxu0 0.0
    %1202 = vmatprep.subr.mxu0 0.0
    %1203 = vmatpush1.msra.mxu0 0.0
    %1204 = vmatprep.subr.mxu0 0.0
    %1205 = vmatpush1.msra.mxu0 0.0
    %1206 = vmatprep.subr.mxu0 0.0
    %1207 = vmatpush1.msra.mxu0 0.0
    %1208 = vmatprep.subr.mxu0 0.0
    %1209 = vmatpush1.msra.mxu0 0.0
    %1210 = vmatprep.subr.mxu0 0.0
    %1211 = vmatpush1.msra.mxu0 0.0
    %1212 = vmatprep.subr.mxu0 0.0
    %1213 = vmatpush1.msra.mxu0 0.0
    %1214 = vmatprep.subr.mxu0 0.0
    %1215 = vmatpush1.msra.mxu0 0.0
    %1216 = vmatprep.subr.mxu0 0.0
    %1217 = vmatpush1.msra.mxu0 0.0
    %1218 = vmatprep.subr.mxu0 0.0
    %1219 = vmatpush1.msra.mxu0 %v1116
    %1220 = vmatprep.subr.mxu0 0.0
    %1221 = vmatpush1.msra.mxu0 %v1115
    %1222 = vmatprep.subr.mxu0 0.0
    %1223 = vmatpush2.msra.mxu0 0.0
    %1224 = vmatprep.subr.mxu0 0.0
    %1225 = vmatpush2.msra.mxu0 0.0
    %1226 = vmatprep.subr.mxu0 0.0
    %1227 = vmatpush2.msra.mxu0 0.0
    %1228 = vmatprep.subr.mxu0 0.0
    %1229 = vmatpush2.msra.mxu0 0.0
    %1230 = vmatprep.subr.mxu0 0.0
    %1231 = vmatpush2.msra.mxu0 0.0
    %1232 = vmatprep.subr.mxu0 0.0
    %1233 = vmatpush2.msra.mxu0 0.0
    %1234 = vmatprep.subr.mxu0 0.0
    %1235 = vmatpush2.msra.mxu0 0.0
    %1236 = vmatprep.subr.mxu0 0.0
    %1237 = vmatpush2.msra.mxu0 0.0
    %1238 = vmatprep.subr.mxu0 0.0
    %1239 = vmatpush2.msra.mxu0 0.0
    %1240 = vmatprep.subr.mxu0 0.0
    %1241 = vmatpush2.msra.mxu0 0.0
    %1242 = vmatprep.subr.mxu0 0.0
    %1243 = vmatpush2.msra.mxu0 0.0
    %1244 = vmatprep.subr.mxu0 0.0
    %1245 = vmatpush2.msra.mxu0 0.0
    %1246 = vmatprep.subr.mxu0 0.0
    %1247 = vmatpush2.msra.mxu0 0.0
    %1248 = vmatprep.subr.mxu0 0.0
    %1249 = vmatpush2.msra.mxu0 0.0
    %1250 = vmatprep.subr.mxu0 0.0
    %1251 = vmatpush2.msra.mxu0 0.0
    %1252 = vmatprep.subr.mxu0 0.0
    %1253 = vmatpush2.msra.mxu0 0.0
    %1254 = vmatprep.mubr.f32.mxu0 0.0
    %1255 = vmatmul.mubr.f32.gmra.mxu0 %v860
    %v1256 = vpop.f32.mrf.mxu0
    %v1257 = vadd.f32 0.0, %v1256
    %v1258 = vpop.f32.mrf.mxu0
    %1259 = vmatprep.mubr.f32.mxu0 0.0
    %1260 = vmatmul.mubr.f32.gmra.mxu0 %v863
    %v1261 = vpop.f32.mrf.mxu0
    %v1262 = vadd.f32 0.0, %v1261
    %v1263 = vpop.f32.mrf.mxu0
    %1264 = vdwg.mxu0
    %v1265 = vld [vmem:[%s15] sm:$0xff]
    %v1266 = vld [vmem:[%s15 + $0x8] sm:$0xff]
    %v1267 = vld [vmem:[%s15 + $0x10] sm:$0xff]
    %v1268 = vld [vmem:[%s15 + $0x18] sm:$0xff]
    %v1269 = vld [vmem:[#allocation11] sm:$0x1]
    %v1271 = vlaneseq
    %v1272 = vshrl.u32 %v1271, 7
    %v1273 = vsub.s32 0, %v1272
    %v1274 = vrot.slane %v1269, %v1273
    %v1277 = vsel %vm613, %v1257, 0
    %v1280 = vsel %vm613, %v1262, 0
    %1282 = vmatprep.subr.mxu0 0.0
    %1283 = vmatpush1.msra.mxu0 0.0
    %1284 = vmatprep.subr.mxu0 0.0
    %1285 = vmatpush1.msra.mxu0 0.0
    %1286 = vmatprep.subr.mxu0 0.0
    %1287 = vmatpush1.msra.mxu0 0.0
    %1288 = vmatprep.subr.mxu0 0.0
    %1289 = vmatpush1.msra.mxu0 0.0
    %1290 = vmatprep.subr.mxu0 0.0
    %1291 = vmatpush1.msra.mxu0 0.0
    %1292 = vmatprep.subr.mxu0 0.0
    %1293 = vmatpush1.msra.mxu0 0.0
    %1294 = vmatprep.subr.mxu0 0.0
    %1295 = vmatpush1.msra.mxu0 0.0
    %1296 = vmatprep.subr.mxu0 0.0
    %1297 = vmatpush1.msra.mxu0 0.0
    %1298 = vmatprep.subr.mxu0 0.0
    %1299 = vmatpush1.msra.mxu0 0.0
    %1300 = vmatprep.subr.mxu0 0.0
    %1301 = vmatpush1.msra.mxu0 0.0
    %1302 = vmatprep.subr.mxu0 0.0
    %1303 = vmatpush1.msra.mxu0 0.0
    %1304 = vmatprep.subr.mxu0 0.0
    %1305 = vmatpush1.msra.mxu0 0.0
    %1306 = vmatprep.subr.mxu0 0.0
    %1307 = vmatpush1.msra.mxu0 %v1268
    %1308 = vmatprep.subr.mxu0 0.0
    %1309 = vmatpush1.msra.mxu0 %v1267
    %1310 = vmatprep.subr.mxu0 0.0
    %1311 = vmatpush1.msra.mxu0 %v1266
    %1312 = vmatprep.subr.mxu0 0.0
    %1313 = vmatpush1.msra.mxu0 %v1265
    %1314 = vmatprep.subr.mxu0 0.0
    %1315 = vmatpush2.msra.mxu0 0.0
    %1316 = vmatprep.subr.mxu0 0.0
    %1317 = vmatpush2.msra.mxu0 0.0
    %1318 = vmatprep.subr.mxu0 0.0
    %1319 = vmatpush2.msra.mxu0 0.0
    %1320 = vmatprep.subr.mxu0 0.0
    %1321 = vmatpush2.msra.mxu0 0.0
    %1322 = vmatprep.subr.mxu0 0.0
    %1323 = vmatpush2.msra.mxu0 0.0
    %1324 = vmatprep.subr.mxu0 0.0
    %1325 = vmatpush2.msra.mxu0 0.0
    %1326 = vmatprep.subr.mxu0 0.0
    %1327 = vmatpush2.msra.mxu0 0.0
    %1328 = vmatprep.subr.mxu0 0.0
    %1329 = vmatpush2.msra.mxu0 0.0
    %1330 = vmatprep.subr.mxu0 0.0
    %1331 = vmatpush2.msra.mxu0 0.0
    %1332 = vmatprep.subr.mxu0 0.0
    %1333 = vmatpush2.msra.mxu0 0.0
    %1334 = vmatprep.subr.mxu0 0.0
    %1335 = vmatpush2.msra.mxu0 0.0
    %1336 = vmatprep.subr.mxu0 0.0
    %1337 = vmatpush2.msra.mxu0 0.0
    %1338 = vmatprep.subr.mxu0 0.0
    %1339 = vmatpush2.msra.mxu0 0.0
    %1340 = vmatprep.subr.mxu0 0.0
    %1341 = vmatpush2.msra.mxu0 0.0
    %1342 = vmatprep.subr.mxu0 0.0
    %1343 = vmatpush2.msra.mxu0 0.0
    %1344 = vmatprep.subr.mxu0 0.0
    %1345 = vmatpush2.msra.mxu0 0.0
    %1346 = vmatprep.mubr.f32.mxu0 0.0
    %1347 = vmatmul.mubr.f32.gmra.mxu0 %v1277
    %v1348 = vpop.f32.mrf.mxu0
    %v1349 = vadd.f32 %v1274, %v1348
    %v1350 = vpop.f32.mrf.mxu0
    %1351 = vmatprep.mubr.f32.mxu0 0.0
    %1352 = vmatmul.mubr.f32.gmra.mxu0 %v1280
    %v1353 = vpop.f32.mrf.mxu0
    %v1354 = vadd.f32 %v1274, %v1353
    %v1355 = vpop.f32.mrf.mxu0
    %1356 = vdwg.mxu0
    %v1357 = vld [vmem:[%s17] sm:$0xff]
    %v1358 = vld [vmem:[%s17 + $0x8] sm:$0xff]
    %v1359 = vld [vmem:[%s17 + $0x10] sm:$0xff]
    %v1360 = vld [vmem:[%s17 + $0x18] sm:$0xff]
    %v1362 = vsel %vm613, %v1115, 0
    %v1365 = vsel %vm613, %v1116, 0
    %1367 = vmatprep.subr.mxu0 0.0
    %1368 = vmatpush1.msra.mxu0 0.0
    %1369 = vmatprep.subr.mxu0 0.0
    %1370 = vmatpush1.msra.mxu0 0.0
    %1371 = vmatprep.subr.mxu0 0.0
    %1372 = vmatpush1.msra.mxu0 0.0
    %1373 = vmatprep.subr.mxu0 0.0
    %1374 = vmatpush1.msra.mxu0 0.0
    %1375 = vmatprep.subr.mxu0 0.0
    %1376 = vmatpush1.msra.mxu0 0.0
    %1377 = vmatprep.subr.mxu0 0.0
    %1378 = vmatpush1.msra.mxu0 0.0
    %1379 = vmatprep.subr.mxu0 0.0
    %1380 = vmatpush1.msra.mxu0 0.0
    %1381 = vmatprep.subr.mxu0 0.0
    %1382 = vmatpush1.msra.mxu0 0.0
    %1383 = vmatprep.subr.mxu0 0.0
    %1384 = vmatpush1.msra.mxu0 0.0
    %1385 = vmatprep.subr.mxu0 0.0
    %1386 = vmatpush1.msra.mxu0 0.0
    %1387 = vmatprep.subr.mxu0 0.0
    %1388 = vmatpush1.msra.mxu0 0.0
    %1389 = vmatprep.subr.mxu0 0.0
    %1390 = vmatpush1.msra.mxu0 0.0
    %1391 = vmatprep.subr.mxu0 0.0
    %1392 = vmatpush1.msra.mxu0 %v1360
    %1393 = vmatprep.subr.mxu0 0.0
    %1394 = vmatpush1.msra.mxu0 %v1359
    %1395 = vmatprep.subr.mxu0 0.0
    %1396 = vmatpush1.msra.mxu0 %v1358
    %1397 = vmatprep.subr.mxu0 0.0
    %1398 = vmatpush1.msra.mxu0 %v1357
    %1399 = vmatprep.subr.mxu0 0.0
    %1400 = vmatpush2.msra.mxu0 0.0
    %1401 = vmatprep.subr.mxu0 0.0
    %1402 = vmatpush2.msra.mxu0 0.0
    %1403 = vmatprep.subr.mxu0 0.0
    %1404 = vmatpush2.msra.mxu0 0.0
    %1405 = vmatprep.subr.mxu0 0.0
    %1406 = vmatpush2.msra.mxu0 0.0
    %1407 = vmatprep.subr.mxu0 0.0
    %1408 = vmatpush2.msra.mxu0 0.0
    %1409 = vmatprep.subr.mxu0 0.0
    %1410 = vmatpush2.msra.mxu0 0.0
    %1411 = vmatprep.subr.mxu0 0.0
    %1412 = vmatpush2.msra.mxu0 0.0
    %1413 = vmatprep.subr.mxu0 0.0
    %1414 = vmatpush2.msra.mxu0 0.0
    %1415 = vmatprep.subr.mxu0 0.0
    %1416 = vmatpush2.msra.mxu0 0.0
    %1417 = vmatprep.subr.mxu0 0.0
    %1418 = vmatpush2.msra.mxu0 0.0
    %1419 = vmatprep.subr.mxu0 0.0
    %1420 = vmatpush2.msra.mxu0 0.0
    %1421 = vmatprep.subr.mxu0 0.0
    %1422 = vmatpush2.msra.mxu0 0.0
    %1423 = vmatprep.subr.mxu0 0.0
    %1424 = vmatpush2.msra.mxu0 0.0
    %1425 = vmatprep.subr.mxu0 0.0
    %1426 = vmatpush2.msra.mxu0 0.0
    %1427 = vmatprep.subr.mxu0 0.0
    %1428 = vmatpush2.msra.mxu0 0.0
    %1429 = vmatprep.subr.mxu0 0.0
    %1430 = vmatpush2.msra.mxu0 0.0
    %1431 = vmatprep.mubr.f32.mxu0 0.0
    %1432 = vmatmul.mubr.f32.gmra.mxu0 %v1362
    %v1433 = vpop.f32.mrf.mxu0
    %v1434 = vadd.f32 0.0, %v1433
    %v1435 = vpop.f32.mrf.mxu0
    %1436 = vmatprep.mubr.f32.mxu0 0.0
    %1437 = vmatmul.mubr.f32.gmra.mxu0 %v1365
    %v1438 = vpop.f32.mrf.mxu0
    %v1439 = vadd.f32 0.0, %v1438
    %v1440 = vpop.f32.mrf.mxu0
    %1441 = vdwg.mxu0
    %v1442 = vadd.f32 %v1349, %v1434
    %v1443 = vadd.f32 %v1354, %v1439
    %v1444 = vmax.f32 %v1442, 0.0
    %v1445 = vmax.f32 %v1443, 0.0
    %1446 = vmatprep.subr.mxu0 0.0
    %1447 = vmatpush1.msra.mxu0 0.0
    %1448 = vmatprep.subr.mxu0 0.0
    %1449 = vmatpush1.msra.mxu0 0.0
    %1450 = vmatprep.subr.mxu0 0.0
    %1451 = vmatpush1.msra.mxu0 0.0
    %1452 = vmatprep.subr.mxu0 0.0
    %1453 = vmatpush1.msra.mxu0 0.0
    %1454 = vmatprep.subr.mxu0 0.0
    %1455 = vmatpush1.msra.mxu0 0.0
    %1456 = vmatprep.subr.mxu0 0.0
    %1457 = vmatpush1.msra.mxu0 0.0
    %1458 = vmatprep.subr.mxu0 0.0
    %1459 = vmatpush1.msra.mxu0 0.0
    %1460 = vmatprep.subr.mxu0 0.0
    %1461 = vmatpush1.msra.mxu0 0.0
    %1462 = vmatprep.subr.mxu0 0.0
    %1463 = vmatpush1.msra.mxu0 0.0
    %1464 = vmatprep.subr.mxu0 0.0
    %1465 = vmatpush1.msra.mxu0 0.0
    %1466 = vmatprep.subr.mxu0 0.0
    %1467 = vmatpush1.msra.mxu0 0.0
    %1468 = vmatprep.subr.mxu0 0.0
    %1469 = vmatpush1.msra.mxu0 0.0
    %1470 = vmatprep.subr.mxu0 0.0
    %1471 = vmatpush1.msra.mxu0 0.0
    %1472 = vmatprep.subr.mxu0 0.0
    %1473 = vmatpush1.msra.mxu0 0.0
    %1474 = vmatprep.subr.mxu0 0.0
    %1475 = vmatpush1.msra.mxu0 %v1445
    %1476 = vmatprep.subr.mxu0 0.0
    %1477 = vmatpush1.msra.mxu0 %v1444
    %1478 = vmatprep.subr.mxu0 0.0
    %1479 = vmatpush2.msra.mxu0 0.0
    %1480 = vmatprep.subr.mxu0 0.0
    %1481 = vmatpush2.msra.mxu0 0.0
    %1482 = vmatprep.subr.mxu0 0.0
    %1483 = vmatpush2.msra.mxu0 0.0
    %1484 = vmatprep.subr.mxu0 0.0
    %1485 = vmatpush2.msra.mxu0 0.0
    %1486 = vmatprep.subr.mxu0 0.0
    %1487 = vmatpush2.msra.mxu0 0.0
    %1488 = vmatprep.subr.mxu0 0.0
    %1489 = vmatpush2.msra.mxu0 0.0
    %1490 = vmatprep.subr.mxu0 0.0
    %1491 = vmatpush2.msra.mxu0 0.0
    %1492 = vmatprep.subr.mxu0 0.0
    %1493 = vmatpush2.msra.mxu0 0.0
    %1494 = vmatprep.subr.mxu0 0.0
    %1495 = vmatpush2.msra.mxu0 0.0
    %1496 = vmatprep.subr.mxu0 0.0
    %1497 = vmatpush2.msra.mxu0 0.0
    %1498 = vmatprep.subr.mxu0 0.0
    %1499 = vmatpush2.msra.mxu0 0.0
    %1500 = vmatprep.subr.mxu0 0.0
    %1501 = vmatpush2.msra.mxu0 0.0
    %1502 = vmatprep.subr.mxu0 0.0
    %1503 = vmatpush2.msra.mxu0 0.0
    %1504 = vmatprep.subr.mxu0 0.0
    %1505 = vmatpush2.msra.mxu0 0.0
    %1506 = vmatprep.subr.mxu0 0.0
    %1507 = vmatpush2.msra.mxu0 0.0
    %1508 = vmatprep.subr.mxu0 0.0
    %1509 = vmatpush2.msra.mxu0 0.0
    %1510 = vmatprep.mubr.f32.mxu0 0.0
    %1511 = vmatmul.mubr.f32.gmra.mxu0 %v1118
    %v1512 = vpop.f32.mrf.mxu0
    %v1513 = vadd.f32 0.0, %v1512
    %v1514 = vpop.f32.mrf.mxu0
    %1515 = vdwg.mxu0
    %v1516 = vld [vmem:[%s18] sm:$0xff]
    %v1517 = vld [vmem:[%s18 + $0x8] sm:$0xff]
    %v1518 = vld [vmem:[%s18 + $0x10] sm:$0xff]
    %v1519 = vld [vmem:[%s18 + $0x18] sm:$0xff]
    %v1520 = vld [vmem:[%s18 + $0x20] sm:$0xff]
    %v1521 = vld [vmem:[%s18 + $0x28] sm:$0xff]
    %v1522 = vld [vmem:[%s18 + $0x30] sm:$0xff]
    %v1523 = vld [vmem:[%s18 + $0x38] sm:$0xff]
    %v1525 = vsel %vm613, %v851, 0
    %1527 = vmatprep.subr.mxu0 0.0
    %1528 = vmatpush1.msra.mxu0 0.0
    %1529 = vmatprep.subr.mxu0 0.0
    %1530 = vmatpush1.msra.mxu0 0.0
    %1531 = vmatprep.subr.mxu0 0.0
    %1532 = vmatpush1.msra.mxu0 0.0
    %1533 = vmatprep.subr.mxu0 0.0
    %1534 = vmatpush1.msra.mxu0 0.0
    %1535 = vmatprep.subr.mxu0 0.0
    %1536 = vmatpush1.msra.mxu0 0.0
    %1537 = vmatprep.subr.mxu0 0.0
    %1538 = vmatpush1.msra.mxu0 0.0
    %1539 = vmatprep.subr.mxu0 0.0
    %1540 = vmatpush1.msra.mxu0 0.0
    %1541 = vmatprep.subr.mxu0 0.0
    %1542 = vmatpush1.msra.mxu0 0.0
    %1543 = vmatprep.subr.mxu0 0.0
    %1544 = vmatpush1.msra.mxu0 0.0
    %1545 = vmatprep.subr.mxu0 0.0
    %1546 = vmatpush1.msra.mxu0 0.0
    %1547 = vmatprep.subr.mxu0 0.0
    %1548 = vmatpush1.msra.mxu0 0.0
    %1549 = vmatprep.subr.mxu0 0.0
    %1550 = vmatpush1.msra.mxu0 0.0
    %1551 = vmatprep.subr.mxu0 0.0
    %1552 = vmatpush1.msra.mxu0 %v1523
    %1553 = vmatprep.subr.mxu0 0.0
    %1554 = vmatpush1.msra.mxu0 %v1522
    %1555 = vmatprep.subr.mxu0 0.0
    %1556 = vmatpush1.msra.mxu0 %v1521
    %1557 = vmatprep.subr.mxu0 0.0
    %1558 = vmatpush1.msra.mxu0 %v1520
    %1559 = vmatprep.subr.mxu0 0.0
    %1560 = vmatpush2.msra.mxu0 0.0
    %1561 = vmatprep.subr.mxu0 0.0
    %1562 = vmatpush2.msra.mxu0 0.0
    %1563 = vmatprep.subr.mxu0 0.0
    %1564 = vmatpush2.msra.mxu0 0.0
    %1565 = vmatprep.subr.mxu0 0.0
    %1566 = vmatpush2.msra.mxu0 0.0
    %1567 = vmatprep.subr.mxu0 0.0
    %1568 = vmatpush2.msra.mxu0 0.0
    %1569 = vmatprep.subr.mxu0 0.0
    %1570 = vmatpush2.msra.mxu0 0.0
    %1571 = vmatprep.subr.mxu0 0.0
    %1572 = vmatpush2.msra.mxu0 0.0
    %1573 = vmatprep.subr.mxu0 0.0
    %1574 = vmatpush2.msra.mxu0 0.0
    %1575 = vmatprep.subr.mxu0 0.0
    %1576 = vmatpush2.msra.mxu0 0.0
    %1577 = vmatprep.subr.mxu0 0.0
    %1578 = vmatpush2.msra.mxu0 0.0
    %1579 = vmatprep.subr.mxu0 0.0
    %1580 = vmatpush2.msra.mxu0 0.0
    %1581 = vmatprep.subr.mxu0 0.0
    %1582 = vmatpush2.msra.mxu0 0.0
    %1583 = vmatprep.subr.mxu0 0.0
    %1584 = vmatpush2.msra.mxu0 0.0
    %1585 = vmatprep.subr.mxu0 0.0
    %1586 = vmatpush2.msra.mxu0 0.0
    %1587 = vmatprep.subr.mxu0 0.0
    %1588 = vmatpush2.msra.mxu0 0.0
    %1589 = vmatprep.subr.mxu0 0.0
    %1590 = vmatpush2.msra.mxu0 0.0
    %1591 = vmatprep.mubr.f32.mxu0 0.0
    %1592 = vmatmul.mubr.f32.gmra.mxu0 %v1525
    %v1593 = vpop.f32.mrf.mxu0
    %v1594 = vadd.f32 0.0, %v1593
    %v1595 = vpop.f32.mrf.mxu0
    %1596 = vdwg.mxu0
    %v1598 = vsel %vm613, %v524, 0
    %1600 = vmatprep.subr.mxu0 0.0
    %1601 = vmatpush1.msra.mxu0 0.0
    %1602 = vmatprep.subr.mxu0 0.0
    %1603 = vmatpush1.msra.mxu0 0.0
    %1604 = vmatprep.subr.mxu0 0.0
    %1605 = vmatpush1.msra.mxu0 0.0
    %1606 = vmatprep.subr.mxu0 0.0
    %1607 = vmatpush1.msra.mxu0 0.0
    %1608 = vmatprep.subr.mxu0 0.0
    %1609 = vmatpush1.msra.mxu0 0.0
    %1610 = vmatprep.subr.mxu0 0.0
    %1611 = vmatpush1.msra.mxu0 0.0
    %1612 = vmatprep.subr.mxu0 0.0
    %1613 = vmatpush1.msra.mxu0 0.0
    %1614 = vmatprep.subr.mxu0 0.0
    %1615 = vmatpush1.msra.mxu0 0.0
    %1616 = vmatprep.subr.mxu0 0.0
    %1617 = vmatpush1.msra.mxu0 0.0
    %1618 = vmatprep.subr.mxu0 0.0
    %1619 = vmatpush1.msra.mxu0 0.0
    %1620 = vmatprep.subr.mxu0 0.0
    %1621 = vmatpush1.msra.mxu0 0.0
    %1622 = vmatprep.subr.mxu0 0.0
    %1623 = vmatpush1.msra.mxu0 0.0
    %1624 = vmatprep.subr.mxu0 0.0
    %1625 = vmatpush1.msra.mxu0 %v1519
    %1626 = vmatprep.subr.mxu0 0.0
    %1627 = vmatpush1.msra.mxu0 %v1518
    %1628 = vmatprep.subr.mxu0 0.0
    %1629 = vmatpush1.msra.mxu0 %v1517
    %1630 = vmatprep.subr.mxu0 0.0
    %1631 = vmatpush1.msra.mxu0 %v1516
    %1632 = vmatprep.subr.mxu0 0.0
    %1633 = vmatpush2.msra.mxu0 0.0
    %1634 = vmatprep.subr.mxu0 0.0
    %1635 = vmatpush2.msra.mxu0 0.0
    %1636 = vmatprep.subr.mxu0 0.0
    %1637 = vmatpush2.msra.mxu0 0.0
    %1638 = vmatprep.subr.mxu0 0.0
    %1639 = vmatpush2.msra.mxu0 0.0
    %1640 = vmatprep.subr.mxu0 0.0
    %1641 = vmatpush2.msra.mxu0 0.0
    %1642 = vmatprep.subr.mxu0 0.0
    %1643 = vmatpush2.msra.mxu0 0.0
    %1644 = vmatprep.subr.mxu0 0.0
    %1645 = vmatpush2.msra.mxu0 0.0
    %1646 = vmatprep.subr.mxu0 0.0
    %1647 = vmatpush2.msra.mxu0 0.0
    %1648 = vmatprep.subr.mxu0 0.0
    %1649 = vmatpush2.msra.mxu0 0.0
    %1650 = vmatprep.subr.mxu0 0.0
    %1651 = vmatpush2.msra.mxu0 0.0
    %1652 = vmatprep.subr.mxu0 0.0
    %1653 = vmatpush2.msra.mxu0 0.0
    %1654 = vmatprep.subr.mxu0 0.0
    %1655 = vmatpush2.msra.mxu0 0.0
    %1656 = vmatprep.subr.mxu0 0.0
    %1657 = vmatpush2.msra.mxu0 0.0
    %1658 = vmatprep.subr.mxu0 0.0
    %1659 = vmatpush2.msra.mxu0 0.0
    %1660 = vmatprep.subr.mxu0 0.0
    %1661 = vmatpush2.msra.mxu0 0.0
    %1662 = vmatprep.subr.mxu0 0.0
    %1663 = vmatpush2.msra.mxu0 0.0
    %1664 = vmatprep.mubr.f32.mxu0 0.0
    %1665 = vmatmul.mubr.f32.gmra.mxu0 %v1598
    %v1666 = vpop.f32.mrf.mxu0
    %v1667 = vadd.f32 %v1594, %v1666
    %v1668 = vpop.f32.mrf.mxu0
    %1669 = vdwg.mxu0
    %v1670 = vld [vmem:[%s18 + $0x40] sm:$0xff]
    %v1671 = vld [vmem:[%s18 + $0x48] sm:$0xff]
    %v1672 = vld [vmem:[%s18 + $0x50] sm:$0xff]
    %v1673 = vld [vmem:[%s18 + $0x58] sm:$0xff]
    %v1675 = vsel %vm613, %v1187, 0
    %1677 = vmatprep.subr.mxu0 0.0
    %1678 = vmatpush1.msra.mxu0 0.0
    %1679 = vmatprep.subr.mxu0 0.0
    %1680 = vmatpush1.msra.mxu0 0.0
    %1681 = vmatprep.subr.mxu0 0.0
    %1682 = vmatpush1.msra.mxu0 0.0
    %1683 = vmatprep.subr.mxu0 0.0
    %1684 = vmatpush1.msra.mxu0 0.0
    %1685 = vmatprep.subr.mxu0 0.0
    %1686 = vmatpush1.msra.mxu0 0.0
    %1687 = vmatprep.subr.mxu0 0.0
    %1688 = vmatpush1.msra.mxu0 0.0
    %1689 = vmatprep.subr.mxu0 0.0
    %1690 = vmatpush1.msra.mxu0 0.0
    %1691 = vmatprep.subr.mxu0 0.0
    %1692 = vmatpush1.msra.mxu0 0.0
    %1693 = vmatprep.subr.mxu0 0.0
    %1694 = vmatpush1.msra.mxu0 0.0
    %1695 = vmatprep.subr.mxu0 0.0
    %1696 = vmatpush1.msra.mxu0 0.0
    %1697 = vmatprep.subr.mxu0 0.0
    %1698 = vmatpush1.msra.mxu0 0.0
    %1699 = vmatprep.subr.mxu0 0.0
    %1700 = vmatpush1.msra.mxu0 0.0
    %1701 = vmatprep.subr.mxu0 0.0
    %1702 = vmatpush1.msra.mxu0 %v1673
    %1703 = vmatprep.subr.mxu0 0.0
    %1704 = vmatpush1.msra.mxu0 %v1672
    %1705 = vmatprep.subr.mxu0 0.0
    %1706 = vmatpush1.msra.mxu0 %v1671
    %1707 = vmatprep.subr.mxu0 0.0
    %1708 = vmatpush1.msra.mxu0 %v1670
    %1709 = vmatprep.subr.mxu0 0.0
    %1710 = vmatpush2.msra.mxu0 0.0
    %1711 = vmatprep.subr.mxu0 0.0
    %1712 = vmatpush2.msra.mxu0 0.0
    %1713 = vmatprep.subr.mxu0 0.0
    %1714 = vmatpush2.msra.mxu0 0.0
    %1715 = vmatprep.subr.mxu0 0.0
    %1716 = vmatpush2.msra.mxu0 0.0
    %1717 = vmatprep.subr.mxu0 0.0
    %1718 = vmatpush2.msra.mxu0 0.0
    %1719 = vmatprep.subr.mxu0 0.0
    %1720 = vmatpush2.msra.mxu0 0.0
    %1721 = vmatprep.subr.mxu0 0.0
    %1722 = vmatpush2.msra.mxu0 0.0
    %1723 = vmatprep.subr.mxu0 0.0
    %1724 = vmatpush2.msra.mxu0 0.0
    %1725 = vmatprep.subr.mxu0 0.0
    %1726 = vmatpush2.msra.mxu0 0.0
    %1727 = vmatprep.subr.mxu0 0.0
    %1728 = vmatpush2.msra.mxu0 0.0
    %1729 = vmatprep.subr.mxu0 0.0
    %1730 = vmatpush2.msra.mxu0 0.0
    %1731 = vmatprep.subr.mxu0 0.0
    %1732 = vmatpush2.msra.mxu0 0.0
    %1733 = vmatprep.subr.mxu0 0.0
    %1734 = vmatpush2.msra.mxu0 0.0
    %1735 = vmatprep.subr.mxu0 0.0
    %1736 = vmatpush2.msra.mxu0 0.0
    %1737 = vmatprep.subr.mxu0 0.0
    %1738 = vmatpush2.msra.mxu0 0.0
    %1739 = vmatprep.subr.mxu0 0.0
    %1740 = vmatpush2.msra.mxu0 0.0
    %1741 = vmatprep.mubr.f32.mxu0 0.0
    %1742 = vmatmul.mubr.f32.gmra.mxu0 %v1675
    %v1743 = vpop.f32.mrf.mxu0
    %v1744 = vadd.f32 0.0, %v1743
    %v1745 = vpop.f32.mrf.mxu0
    %1746 = vdwg.mxu0
    %v1747 = vadd.f32 %v1667, %v1744
    %v1748 = vld [vmem:[%s18 + $0x60] sm:$0xff]
    %v1749 = vld [vmem:[%s18 + $0x68] sm:$0xff]
    %v1750 = vld [vmem:[%s18 + $0x70] sm:$0xff]
    %v1751 = vld [vmem:[%s18 + $0x78] sm:$0xff]
    %v1753 = vsel %vm613, %v1513, 0
    %1755 = vmatprep.subr.mxu0 0.0
    %1756 = vmatpush1.msra.mxu0 0.0
    %1757 = vmatprep.subr.mxu0 0.0
    %1758 = vmatpush1.msra.mxu0 0.0
    %1759 = vmatprep.subr.mxu0 0.0
    %1760 = vmatpush1.msra.mxu0 0.0
    %1761 = vmatprep.subr.mxu0 0.0
    %1762 = vmatpush1.msra.mxu0 0.0
    %1763 = vmatprep.subr.mxu0 0.0
    %1764 = vmatpush1.msra.mxu0 0.0
    %1765 = vmatprep.subr.mxu0 0.0
    %1766 = vmatpush1.msra.mxu0 0.0
    %1767 = vmatprep.subr.mxu0 0.0
    %1768 = vmatpush1.msra.mxu0 0.0
    %1769 = vmatprep.subr.mxu0 0.0
    %1770 = vmatpush1.msra.mxu0 0.0
    %1771 = vmatprep.subr.mxu0 0.0
    %1772 = vmatpush1.msra.mxu0 0.0
    %1773 = vmatprep.subr.mxu0 0.0
    %1774 = vmatpush1.msra.mxu0 0.0
    %1775 = vmatprep.subr.mxu0 0.0
    %1776 = vmatpush1.msra.mxu0 0.0
    %1777 = vmatprep.subr.mxu0 0.0
    %1778 = vmatpush1.msra.mxu0 0.0
    %1779 = vmatprep.subr.mxu0 0.0
    %1780 = vmatpush1.msra.mxu0 %v1751
    %1781 = vmatprep.subr.mxu0 0.0
    %1782 = vmatpush1.msra.mxu0 %v1750
    %1783 = vmatprep.subr.mxu0 0.0
    %1784 = vmatpush1.msra.mxu0 %v1749
    %1785 = vmatprep.subr.mxu0 0.0
    %1786 = vmatpush1.msra.mxu0 %v1748
    %1787 = vmatprep.subr.mxu0 0.0
    %1788 = vmatpush2.msra.mxu0 0.0
    %1789 = vmatprep.subr.mxu0 0.0
    %1790 = vmatpush2.msra.mxu0 0.0
    %1791 = vmatprep.subr.mxu0 0.0
    %1792 = vmatpush2.msra.mxu0 0.0
    %1793 = vmatprep.subr.mxu0 0.0
    %1794 = vmatpush2.msra.mxu0 0.0
    %1795 = vmatprep.subr.mxu0 0.0
    %1796 = vmatpush2.msra.mxu0 0.0
    %1797 = vmatprep.subr.mxu0 0.0
    %1798 = vmatpush2.msra.mxu0 0.0
    %1799 = vmatprep.subr.mxu0 0.0
    %1800 = vmatpush2.msra.mxu0 0.0
    %1801 = vmatprep.subr.mxu0 0.0
    %1802 = vmatpush2.msra.mxu0 0.0
    %1803 = vmatprep.subr.mxu0 0.0
    %1804 = vmatpush2.msra.mxu0 0.0
    %1805 = vmatprep.subr.mxu0 0.0
    %1806 = vmatpush2.msra.mxu0 0.0
    %1807 = vmatprep.subr.mxu0 0.0
    %1808 = vmatpush2.msra.mxu0 0.0
    %1809 = vmatprep.subr.mxu0 0.0
    %1810 = vmatpush2.msra.mxu0 0.0
    %1811 = vmatprep.subr.mxu0 0.0
    %1812 = vmatpush2.msra.mxu0 0.0
    %1813 = vmatprep.subr.mxu0 0.0
    %1814 = vmatpush2.msra.mxu0 0.0
    %1815 = vmatprep.subr.mxu0 0.0
    %1816 = vmatpush2.msra.mxu0 0.0
    %1817 = vmatprep.subr.mxu0 0.0
    %1818 = vmatpush2.msra.mxu0 0.0
    %1819 = vmatprep.mubr.f32.mxu0 0.0
    %1820 = vmatmul.mubr.f32.gmra.mxu0 %v1753
    %v1821 = vpop.f32.mrf.mxu0
    %v1822 = vadd.f32 0.0, %v1821
    %v1823 = vpop.f32.mrf.mxu0
    %1824 = vdwg.mxu0
    %v1825 = vadd.f32 %v1747, %v1822
    %v1826 = vld [vmem:[#allocation13] sm:$0x1]
    %v1828 = vlaneseq
    %v1829 = vshrl.u32 %v1828, 7
    %v1830 = vsub.s32 0, %v1829
    %v1831 = vrot.slane %v1826, %v1830
    %v1833 = vadd.f32 %v1825, %v1831
    %v1834 = vmax.f32 %v1833, 0.0
    %v1835 = vld [vmem:[%s20] sm:$0xff]
    %v1836 = vld [vmem:[%s20 + $0x8] sm:$0xff]
    %v1837 = vld [vmem:[%s20 + $0x10] sm:$0xff]
    %v1838 = vld [vmem:[%s20 + $0x18] sm:$0xff]
    %v1839 = vld [vmem:[#allocation14] sm:$0x1]
    %v1841 = vlaneseq
    %v1842 = vshrl.u32 %v1841, 7
    %v1843 = vsub.s32 0, %v1842
    %v1844 = vrot.slane %v1839, %v1843
    %v1847 = vsel %vm613, %v1834, 0
    %1849 = vmatprep.subr.mxu0 0.0
    %1850 = vmatpush1.msra.mxu0 0.0
    %1851 = vmatprep.subr.mxu0 0.0
    %1852 = vmatpush1.msra.mxu0 0.0
    %1853 = vmatprep.subr.mxu0 0.0
    %1854 = vmatpush1.msra.mxu0 0.0
    %1855 = vmatprep.subr.mxu0 0.0
    %1856 = vmatpush1.msra.mxu0 0.0
    %1857 = vmatprep.subr.mxu0 0.0
    %1858 = vmatpush1.msra.mxu0 0.0
    %1859 = vmatprep.subr.mxu0 0.0
    %1860 = vmatpush1.msra.mxu0 0.0
    %1861 = vmatprep.subr.mxu0 0.0
    %1862 = vmatpush1.msra.mxu0 0.0
    %1863 = vmatprep.subr.mxu0 0.0
    %1864 = vmatpush1.msra.mxu0 0.0
    %1865 = vmatprep.subr.mxu0 0.0
    %1866 = vmatpush1.msra.mxu0 0.0
    %1867 = vmatprep.subr.mxu0 0.0
    %1868 = vmatpush1.msra.mxu0 0.0
    %1869 = vmatprep.subr.mxu0 0.0
    %1870 = vmatpush1.msra.mxu0 0.0
    %1871 = vmatprep.subr.mxu0 0.0
    %1872 = vmatpush1.msra.mxu0 0.0
    %1873 = vmatprep.subr.mxu0 0.0
    %1874 = vmatpush1.msra.mxu0 %v1838
    %1875 = vmatprep.subr.mxu0 0.0
    %1876 = vmatpush1.msra.mxu0 %v1837
    %1877 = vmatprep.subr.mxu0 0.0
    %1878 = vmatpush1.msra.mxu0 %v1836
    %1879 = vmatprep.subr.mxu0 0.0
    %1880 = vmatpush1.msra.mxu0 %v1835
    %1881 = vmatprep.subr.mxu0 0.0
    %1882 = vmatpush2.msra.mxu0 0.0
    %1883 = vmatprep.subr.mxu0 0.0
    %1884 = vmatpush2.msra.mxu0 0.0
    %1885 = vmatprep.subr.mxu0 0.0
    %1886 = vmatpush2.msra.mxu0 0.0
    %1887 = vmatprep.subr.mxu0 0.0
    %1888 = vmatpush2.msra.mxu0 0.0
    %1889 = vmatprep.subr.mxu0 0.0
    %1890 = vmatpush2.msra.mxu0 0.0
    %1891 = vmatprep.subr.mxu0 0.0
    %1892 = vmatpush2.msra.mxu0 0.0
    %1893 = vmatprep.subr.mxu0 0.0
    %1894 = vmatpush2.msra.mxu0 0.0
    %1895 = vmatprep.subr.mxu0 0.0
    %1896 = vmatpush2.msra.mxu0 0.0
    %1897 = vmatprep.subr.mxu0 0.0
    %1898 = vmatpush2.msra.mxu0 0.0
    %1899 = vmatprep.subr.mxu0 0.0
    %1900 = vmatpush2.msra.mxu0 0.0
    %1901 = vmatprep.subr.mxu0 0.0
    %1902 = vmatpush2.msra.mxu0 0.0
    %1903 = vmatprep.subr.mxu0 0.0
    %1904 = vmatpush2.msra.mxu0 0.0
    %1905 = vmatprep.subr.mxu0 0.0
    %1906 = vmatpush2.msra.mxu0 0.0
    %1907 = vmatprep.subr.mxu0 0.0
    %1908 = vmatpush2.msra.mxu0 0.0
    %1909 = vmatprep.subr.mxu0 0.0
    %1910 = vmatpush2.msra.mxu0 0.0
    %1911 = vmatprep.subr.mxu0 0.0
    %1912 = vmatpush2.msra.mxu0 0.0
    %1913 = vmatprep.mubr.f32.mxu0 0.0
    %1914 = vmatmul.mubr.f32.gmra.mxu0 %v1847
    %v1915 = vpop.f32.mrf.mxu0
    %v1916 = vadd.f32 %v1844, %v1915
    %v1917 = vpop.f32.mrf.mxu0
    %1918 = vdwg.mxu0
    %v1919 = vmax.f32 %v1916, 0.0
    %v1920 = vld [vmem:[%s22] sm:$0xff]
    %v1921 = vld [vmem:[%s22 + $0x8] sm:$0xff]
    %v1922 = vld [vmem:[#allocation16] sm:$0x1]
    %v1924 = vlaneseq
    %v1925 = vshrl.u32 %v1924, 7
    %v1926 = vsub.s32 0, %v1925
    %v1927 = vrot.slane %v1922, %v1926
    %v1930 = vsel %vm195, %v1919, 0
    %1932 = vmatprep.subr.mxu0 0.0
    %1933 = vmatpush1.msra.mxu0 0.0
    %1934 = vmatprep.subr.mxu0 0.0
    %1935 = vmatpush1.msra.mxu0 0.0
    %1936 = vmatprep.subr.mxu0 0.0
    %1937 = vmatpush1.msra.mxu0 0.0
    %1938 = vmatprep.subr.mxu0 0.0
    %1939 = vmatpush1.msra.mxu0 0.0
    %1940 = vmatprep.subr.mxu0 0.0
    %1941 = vmatpush1.msra.mxu0 0.0
    %1942 = vmatprep.subr.mxu0 0.0
    %1943 = vmatpush1.msra.mxu0 0.0
    %1944 = vmatprep.subr.mxu0 0.0
    %1945 = vmatpush1.msra.mxu0 0.0
    %1946 = vmatprep.subr.mxu0 0.0
    %1947 = vmatpush1.msra.mxu0 0.0
    %1948 = vmatprep.subr.mxu0 0.0
    %1949 = vmatpush1.msra.mxu0 0.0
    %1950 = vmatprep.subr.mxu0 0.0
    %1951 = vmatpush1.msra.mxu0 0.0
    %1952 = vmatprep.subr.mxu0 0.0
    %1953 = vmatpush1.msra.mxu0 0.0
    %1954 = vmatprep.subr.mxu0 0.0
    %1955 = vmatpush1.msra.mxu0 0.0
    %1956 = vmatprep.subr.mxu0 0.0
    %1957 = vmatpush1.msra.mxu0 0.0
    %1958 = vmatprep.subr.mxu0 0.0
    %1959 = vmatpush1.msra.mxu0 0.0
    %1960 = vmatprep.subr.mxu0 0.0
    %1961 = vmatpush1.msra.mxu0 %v1921
    %1962 = vmatprep.subr.mxu0 0.0
    %1963 = vmatpush1.msra.mxu0 %v1920
    %1964 = vmatprep.subr.mxu0 0.0
    %1965 = vmatpush2.msra.mxu0 0.0
    %1966 = vmatprep.subr.mxu0 0.0
    %1967 = vmatpush2.msra.mxu0 0.0
    %1968 = vmatprep.subr.mxu0 0.0
    %1969 = vmatpush2.msra.mxu0 0.0
    %1970 = vmatprep.subr.mxu0 0.0
    %1971 = vmatpush2.msra.mxu0 0.0
    %1972 = vmatprep.subr.mxu0 0.0
    %1973 = vmatpush2.msra.mxu0 0.0
    %1974 = vmatprep.subr.mxu0 0.0
    %1975 = vmatpush2.msra.mxu0 0.0
    %1976 = vmatprep.subr.mxu0 0.0
    %1977 = vmatpush2.msra.mxu0 0.0
    %1978 = vmatprep.subr.mxu0 0.0
    %1979 = vmatpush2.msra.mxu0 0.0
    %1980 = vmatprep.subr.mxu0 0.0
    %1981 = vmatpush2.msra.mxu0 0.0
    %1982 = vmatprep.subr.mxu0 0.0
    %1983 = vmatpush2.msra.mxu0 0.0
    %1984 = vmatprep.subr.mxu0 0.0
    %1985 = vmatpush2.msra.mxu0 0.0
    %1986 = vmatprep.subr.mxu0 0.0
    %1987 = vmatpush2.msra.mxu0 0.0
    %1988 = vmatprep.subr.mxu0 0.0
    %1989 = vmatpush2.msra.mxu0 0.0
    %1990 = vmatprep.subr.mxu0 0.0
    %1991 = vmatpush2.msra.mxu0 0.0
    %1992 = vmatprep.subr.mxu0 0.0
    %1993 = vmatpush2.msra.mxu0 0.0
    %1994 = vmatprep.subr.mxu0 0.0
    %1995 = vmatpush2.msra.mxu0 0.0
    %1996 = vmatprep.mubr.f32.mxu0 0.0
    %1997 = vmatmul.mubr.f32.gmra.mxu0 %v1930
    %v1998 = vpop.f32.mrf.mxu0
    %v1999 = vadd.f32 %v1927, %v1998
    %v2000 = vpop.f32.mrf.mxu0
    %2001 = vdwg.mxu0
    %vm2002 = vcmask 9216
    %v2003 = vsel %vm2002, %v1999, -inf
    %2004 = vmax.xlane.f32.xlu0 %v2003
    %v2005 = vpop.xlane.xlu0 %2004
    %v2006 = vsub.f32 %v1999, %v2005
    %v2007 = vmul.f32 %v2006, 1.442695
    %v2008 = vpow.pop %v2007
    %v2009 = vsel %vm2002, %v2008, 0.0
    %2010 = vadd.xlane.f32.xlu0 %v2009
    %v2011 = vpop.xlane.xlu0 %2010
    %v2012 = vlog2.pop %v2011
    %v2013 = vmul.f32 %v2012, 0.6931472
    %v2014 = vadd.f32 %v2005, %v2013
    %v2015 = vsub.f32 %v1999, %v2014
    %2016 = vst.msk [vmem:[#allocation17] sm:$0x3] %vm2002, %v2015
    // Predicated region
    $region134: #{asap_forward.1} parent=1 // pred_check
      _
    $region135: #{asap_forward.1} parent=1 // pred_check_branch
      %2018 = sbr.rel (0) target = $region137
    $region136: #{asap_forward.1} parent=1 // pred_region
      %s2020 = ssub.s32 32, 32
      %2021 = vsyncadd [#allocation4], %s2020
      %s2023 = sshll.u32 [#allocation17], 4
      %s2024 = int_to_ptr.vmem [resolvable:$true] %s2023
      %2026 = dma.vmem_to_hbm [thread:$0]  %s2024, 32, %s24, [#allocation4]
    $region137: #{asap_forward.1} parent=1 // pred_fallthru
      _
    // Predicated region
    $region138: #{asap_forward.1} parent=1 // pred_check
      _
    $region139: #{asap_forward.1} parent=1 // pred_check_branch
      %2028 = sbr.rel (0) target = $region141
    $region140: #{asap_forward.1} parent=1 // pred_region
      %2029 = dma.done [#allocation4], 32
    $region141: #{asap_forward.1} parent=1 // pred_fallthru
      _
    %2030 = vsyncpa [#allocation3], 1
    %2031 = vsyncpa [#allocation6], 1
    %2032 = vsyncpa [#allocation9], 1
    %2033 = vsyncpa [#allocation12], 1
    %2034 = vsyncpa [#allocation15], 1
    %2035 = vsyncpa [#allocation4], 1

</llo_original>
